<compile_context>
chip_gen: v5e
topology: v5e:2x2
jax: 0.10.0
libtpu: 0.0.40
codegen_flags: <defaults>
</compile_context>

<pallas_src>
import functools

import jax
import jax.numpy as jnp
from jax.experimental import pallas as pl
from jax.experimental.pallas import tpu as pltpu


_LANES = 128
_TM_DEFAULT = 512                      # >=512 rows ~= 85% of HBM roofline; fits all gens
_VMEM_LIMIT = 48 * 1024 * 1024         # explicit; safe on v5e/v6e (128 MiB) and v7x (64 MiB)


def _round_up(x, m):
    return (x + m - 1) // m * m


def _pad_rows(a, m_pad):
    m = a.shape[0]
    if m == m_pad:
        return a
    return jnp.pad(a, ((0, m_pad - m), (0, 0)))


# ----------------------------------------------------------------------------
# Pallas kernels
# ----------------------------------------------------------------------------
def _conv_kernel(relu_out):
    def kernel(p_ref, w_ref, b_ref, o_ref):
        acc = jnp.dot(p_ref[...], w_ref[...], preferred_element_type=jnp.float32)
        acc = acc + b_ref[...]                       # (1, Cp) broadcasts over rows (f32)
        if relu_out:
            acc = jnp.maximum(acc, 0.0)
        o_ref[...] = acc.astype(o_ref.dtype)
    return kernel


def _residual_kernel(relu_out):
    def kernel(p_ref, w3_ref, w1_ref, h_ref, o_ref):
        # 3x3 conv (bias-free) + ReLU; intermediate stays in vregs/VMEM.
        y = jnp.dot(p_ref[...], w3_ref[...], preferred_element_type=jnp.float32)
        y = jnp.maximum(y, 0.0)
        # 1x1 conv (bias-free) + residual add in f32.
        out = h_ref[...] + jnp.dot(y.astype(w1_ref.dtype), w1_ref[...],
                                   preferred_element_type=jnp.float32)
        if relu_out:
            out = jnp.maximum(out, 0.0)
        o_ref[...] = out.astype(o_ref.dtype)
    return kernel


# ----------------------------------------------------------------------------
# Pallas wrappers (M-tiled, pipelined, lane-padded output)
# ----------------------------------------------------------------------------
def fused_conv_matmul(patches, weight, bias, relu_out, tm=_TM_DEFAULT):
    """[relu](patches @ weight + bias); output cols padded to a multiple of 128."""
    M, K = patches.shape
    Cout = weight.shape[1]
    Cp = _round_up(Cout, _LANES)
    tm = min(tm, _round_up(M, 8))
    m_pad = _round_up(M, tm)

    p = _pad_rows(patches.astype(jnp.bfloat16), m_pad)
    w = jnp.pad(weight, ((0, 0), (0, Cp - Cout))).astype(jnp.bfloat16)
    b = jnp.pad(bias, (0, Cp - Cout)).astype(jnp.float32).reshape(1, Cp)

    out = pl.pallas_call(
        _conv_kernel(relu_out),
        out_shape=jax.ShapeDtypeStruct((m_pad, Cp), jnp.float32),
        grid=(m_pad // tm,),
        in_specs=[
            pl.BlockSpec((tm, K), lambda i: (i, 0)),
            pl.BlockSpec((K, Cp), lambda i: (0, 0)),   # weight resident across tiles
            pl.BlockSpec((1, Cp), lambda i: (0, 0)),
        ],
        out_specs=pl.BlockSpec((tm, Cp), lambda i: (i, 0)),
        compiler_params=pltpu.CompilerParams(
            dimension_semantics=("parallel",),
            vmem_limit_bytes=_VMEM_LIMIT,
        ),
    )(p, w, b)
    return out[:M]                                     # rows un-padded; cols stay (M, Cp)


def fused_residual_block(patches, w3, w1, h_flat, relu_out, tm=_TM_DEFAULT):
    """out = [relu](h + relu(patches @ w3) @ w1), one launch, residual aliased to output."""
    M, K3 = patches.shape
    nrh = w3.shape[1]
    Cp = w1.shape[1]                                   # already lane-padded
    tm = min(tm, _round_up(M, 8))
    m_pad = _round_up(M, tm)

    p = _pad_rows(patches, m_pad)                      # bf16
    h = _pad_rows(h_flat, m_pad)                       # f32, (m_pad, Cp)

    out = pl.pallas_call(
        _residual_kernel(relu_out),
        out_shape=jax.ShapeDtypeStruct((m_pad, Cp), jnp.float32),
        grid=(m_pad // tm,),
        in_specs=[
            pl.BlockSpec((tm, K3), lambda i: (i, 0)),
            pl.BlockSpec((K3, nrh), lambda i: (0, 0)),
            pl.BlockSpec((nrh, Cp), lambda i: (0, 0)),
            pl.BlockSpec((tm, Cp), lambda i: (i, 0)),  # residual h
        ],
        out_specs=pl.BlockSpec((tm, Cp), lambda i: (i, 0)),
        input_output_aliases={3: 0},                   # accumulate into h's buffer
        compiler_params=pltpu.CompilerParams(
            dimension_semantics=("parallel",),
            vmem_limit_bytes=_VMEM_LIMIT,
        ),
    )(p, w3, w1, h)
    return out[:M]


# ----------------------------------------------------------------------------
# Glue: im2col patch extraction (pure data rearrangement, stays in plain JAX)
# ----------------------------------------------------------------------------
def im2col(x, kh, kw, stride, pad, out_dtype=jnp.bfloat16):
    N, H, W, C = x.shape
    xp = jnp.pad(x.astype(out_dtype), ((0, 0), (pad, pad), (pad, pad), (0, 0)))
    Ho = (H + 2 * pad - kh) // stride + 1
    Wo = (W + 2 * pad - kw) // stride + 1
    taps = [xp[:, i:i + stride * Ho:stride, j:j + stride * Wo:stride, :]
            for i in range(kh) for j in range(kw)]
    patches = jnp.stack(taps, axis=3)                  # (N, Ho, Wo, kh*kw, C)
    return patches.reshape(N * Ho * Wo, kh * kw * C), Ho, Wo


# ----------------------------------------------------------------------------
# EncoderBot forward (Pallas path)
# ----------------------------------------------------------------------------
def encoder_bot_forward(x_nhwc, params, num_residual_layers):
    N = x_nhwc.shape[0]
    nh2 = params["b1"].shape[0]          # num_hiddens // 2
    nh = params["b2"].shape[0]           # num_hiddens
    Cp = _round_up(nh, _LANES)           # lane-padded channel count for residual stack

    # conv_1: 4x4, stride 2, pad 1, bias -> ReLU
    p, Ho, Wo = im2col(x_nhwc, 4, 4, 2, 1)
    h = fused_conv_matmul(p, params["w1"].reshape(-1, nh2), params["b1"], relu_out=True)
    h = h[:, :nh2].reshape(N, Ho, Wo, nh2)

    # conv_2: 4x4, stride 2, pad 1, bias -> ReLU
    p, Ho, Wo = im2col(h, 4, 4, 2, 1)
    h = fused_conv_matmul(p, params["w2"].reshape(-1, nh), params["b2"], relu_out=True)
    h = h[:, :nh].reshape(N, Ho, Wo, nh)

    # conv_3: 3x3, stride 1, pad 1, bias (no ReLU) — keep output lane-padded to Cp
    p, Ho, Wo = im2col(h, 3, 3, 1, 1)
    h = fused_conv_matmul(p, params["w3"].reshape(-1, nh), params["b3"], relu_out=False)
    h = h.reshape(N, Ho, Wo, Cp)                        # padded channels are exactly zero

    # Residual stack: x = x + conv1x1(relu(conv3x3(relu(x)))); final ReLU fused into
    # the last layer's kernel.  Each layer is ONE pallas_call.
    M = N * Ho * Wo
    for l in range(num_residual_layers):
        wr3 = params["wr3"][l]                          # (3, 3, nh, nrh)
        wr1 = params["wr1"][l]                          # (1, 1, nrh, nh)
        nrh = wr3.shape[-1]
        # pad W3's input channels to Cp (zero rows) and W1's output channels to Cp.
        wr3p = jnp.pad(wr3, ((0, 0), (0, 0), (0, Cp - nh), (0, 0))
                       ).reshape(-1, nrh).astype(jnp.bfloat16)
        wr1p = jnp.pad(wr1.reshape(nrh, nh), ((0, 0), (0, Cp - nh))).astype(jnp.bfloat16)
        # pre-ReLU once on the un-replicated activation; replicated patches are bf16.
        p, _, _ = im2col(jnp.maximum(h, 0.0), 3, 3, 1, 1)
        h_flat = fused_residual_block(p, wr3p, wr1p, h.reshape(M, Cp),
                                      relu_out=(l == num_residual_layers - 1))
        h = h_flat.reshape(N, Ho, Wo, Cp)

    return h[..., :nh]                                  # NHWC, true channel count


# ----------------------------------------------------------------------------
# Pure-JAX reference (for correctness check)
# ----------------------------------------------------------------------------
def _conv(x, w_hwio, b, stride, pad):
    y = jax.lax.conv_general_dilated(
        x, w_hwio, window_strides=(stride, stride),
        padding=[(pad, pad), (pad, pad)],
        dimension_numbers=("NHWC", "HWIO", "NHWC"))
    if b is not None:
        y = y + b
    return y


def ref_forward(x, params, num_residual_layers):
    h = jax.nn.relu(_conv(x, params["w1"], params["b1"], 2, 1))
    h = jax.nn.relu(_conv(h, params["w2"], params["b2"], 2, 1))
    h = _conv(h, params["w3"], params["b3"], 1, 1)
    for l in range(num_residual_layers):
        y = jax.nn.relu(_conv(jax.nn.relu(h), params["wr3"][l], None, 1, 1))
        h = h + _conv(y, params["wr1"][l], None, 1, 0)
    return jax.nn.relu(h)


# ----------------------------------------------------------------------------
if __name__ == "__main__":
    N, Cin, H, W = 2, 4, 16, 16
    num_hiddens = 32
    num_residual_layers = 2
    num_residual_hiddens = 16
    nh2 = num_hiddens // 2

    key = jax.random.PRNGKey(0)
    keys = jax.random.split(key, 16)

    # Deterministic synthetic parameters (HWIO layout, matching the PyTorch module).
    params = {
        "w1": 0.1 * jax.random.normal(keys[1], (4, 4, Cin, nh2), jnp.float32),
        "b1": 0.01 * jax.random.normal(keys[2], (nh2,), jnp.float32),
        "w2": 0.05 * jax.random.normal(keys[3], (4, 4, nh2, num_hiddens), jnp.float32),
        "b2": 0.01 * jax.random.normal(keys[4], (num_hiddens,), jnp.float32),
        "w3": 0.05 * jax.random.normal(keys[5], (3, 3, num_hiddens, num_hiddens), jnp.float32),
        "b3": 0.01 * jax.random.normal(keys[6], (num_hiddens,), jnp.float32),
        "wr3": [0.05 * jax.random.normal(keys[7 + 2 * l],
                                         (3, 3, num_hiddens, num_residual_hiddens),
                                         jnp.float32)
                for l in range(num_residual_layers)],
        "wr1": [0.05 * jax.random.normal(keys[8 + 2 * l],
                                         (1, 1, num_residual_hiddens, num_hiddens),
                                         jnp.float32)
                for l in range(num_residual_layers)],
    }

    # Input (NHWC here; equivalent to PyTorch NCHW (2, 4, 16, 16)).
    x = jax.random.normal(keys[0], (N, H, W, Cin), jnp.float32)

    fwd = jax.jit(functools.partial(encoder_bot_forward,
                                    num_residual_layers=num_residual_layers))
    out = jax.block_until_ready(fwd(x, params))

    ref = jax.block_until_ready(ref_forward(x, params, num_residual_layers))
    assert out.shape == (N, H // 4, W // 4, num_hiddens), out.shape
    max_err = float(jnp.max(jnp.abs(out - ref)))
    # bf16 matmul inputs (f32 accumulation) -> tolerance looser than the pure-f32 check.
    assert jnp.allclose(out, ref, atol=3e-2, rtol=3e-2), max_err

    print("KERNEL_OK")
</pallas_src>

<mosaic_0001>
module attributes {stable_mosaic.version = 11 : i64} {
  func.func @kernel(%arg0: i32, %arg1: memref<128x64xbf16, #tpu.memory_space<vmem>>, %arg2: memref<64x128xbf16, #tpu.memory_space<vmem>>, %arg3: memref<1x128xf32, #tpu.memory_space<vmem>>, %arg4: memref<128x128xf32, #tpu.memory_space<vmem>>) attributes {dimension_semantics = [#tpu.dimension_semantics<parallel>], iteration_bounds = array<i64: 1>, scalar_prefetch = 0 : i64, scratch_operands = 0 : i64, tpu.core_type = #tpu.core_type<tc>, window_params = [{transform_indices = @transform_0, window_bounds = array<i64: 128, 64>}, {pipeline_mode = #tpu.pipeline_mode<synchronous>, transform_indices = @transform_1, window_bounds = array<i64: 64, 128>}, {pipeline_mode = #tpu.pipeline_mode<synchronous>, transform_indices = @transform_2, window_bounds = array<i64: 1, 128>}, {transform_indices = @transform_3, window_bounds = array<i64: 128, 128>}]} {
    %c0 = arith.constant 0 : index
    %c0_0 = arith.constant 0 : index
    %0 = vector.load %arg1[%c0, %c0_0] : memref<128x64xbf16, #tpu.memory_space<vmem>>, vector<128x64xbf16>
    %c0_1 = arith.constant 0 : index
    %c0_2 = arith.constant 0 : index
    %1 = vector.load %arg2[%c0_1, %c0_2] : memref<64x128xbf16, #tpu.memory_space<vmem>>, vector<64x128xbf16>
    %cst = arith.constant dense<0.000000e+00> : vector<128x128xf32>
    %2 = tpu.matmul %0, %1, %cst {dimension_numbers = #tpu.dot_dimension_numbers<[1], [0], [0], [1], [0, 0, 1, 1], [], []>} : vector<128x64xbf16>, vector<64x128xbf16>, vector<128x128xf32> -> vector<128x128xf32>
    %c0_3 = arith.constant 0 : index
    %c0_4 = arith.constant 0 : index
    %3 = vector.load %arg3[%c0_3, %c0_4] : memref<1x128xf32, #tpu.memory_space<vmem>>, vector<1x128xf32>
    %4 = vector.broadcast %3 : vector<1x128xf32> to vector<128x128xf32>
    %5 = arith.addf %2, %4 : vector<128x128xf32>
    %cst_5 = arith.constant 0.000000e+00 : f32
    %6 = vector.broadcast %cst_5 : f32 to vector<128x128xf32>
    %7 = arith.maximumf %5, %6 : vector<128x128xf32>
    %c0_6 = arith.constant 0 : index
    %c0_7 = arith.constant 0 : index
    %8 = vector.load %arg4[%c0_6, %c0_7] : memref<128x128xf32, #tpu.memory_space<vmem>>, vector<128x128xf32>
    tpu.vector_store %arg4[%c0_6, %c0_7], %7 {strides = array<i32>} : memref<128x128xf32, #tpu.memory_space<vmem>>, vector<128x128xf32>,
    return
  }
  func.func @transform_0(%arg0: i32) -> (i32, i32) {
    %c0_i32 = arith.constant 0 : i32
    %c0_i32_0 = arith.constant 0 : i32
    return %arg0, %c0_i32 : i32, i32
  }
  func.func @transform_1(%arg0: i32) -> (i32, i32) {
    %c0_i32 = arith.constant 0 : i32
    %c0_i32_0 = arith.constant 0 : i32
    %c0_i32_1 = arith.constant 0 : i32
    return %c0_i32, %c0_i32_0 : i32, i32
  }
  func.func @transform_2(%arg0: i32) -> (i32, i32) {
    %c0_i32 = arith.constant 0 : i32
    %c0_i32_0 = arith.constant 0 : i32
    %c0_i32_1 = arith.constant 0 : i32
    return %c0_i32, %c0_i32_0 : i32, i32
  }
  func.func @transform_3(%arg0: i32) -> (i32, i32) {
    %c0_i32 = arith.constant 0 : i32
    %c0_i32_0 = arith.constant 0 : i32
    return %arg0, %c0_i32 : i32, i32
  }
}

module attributes {stable_mosaic.version = 11 : i64} {
  func.func @kernel(%arg0: i32, %arg1: memref<32x256xbf16, #tpu.memory_space<vmem>>, %arg2: memref<256x128xbf16, #tpu.memory_space<vmem>>, %arg3: memref<1x128xf32, #tpu.memory_space<vmem>>, %arg4: memref<32x128xf32, #tpu.memory_space<vmem>>) attributes {dimension_semantics = [#tpu.dimension_semantics<parallel>], iteration_bounds = array<i64: 1>, scalar_prefetch = 0 : i64, scratch_operands = 0 : i64, tpu.core_type = #tpu.core_type<tc>, window_params = [{transform_indices = @transform_0, window_bounds = array<i64: 32, 256>}, {pipeline_mode = #tpu.pipeline_mode<synchronous>, transform_indices = @transform_1, window_bounds = array<i64: 256, 128>}, {pipeline_mode = #tpu.pipeline_mode<synchronous>, transform_indices = @transform_2, window_bounds = array<i64: 1, 128>}, {transform_indices = @transform_3, window_bounds = array<i64: 32, 128>}]} {
    %c0 = arith.constant 0 : index
    %c0_0 = arith.constant 0 : index
    %0 = vector.load %arg1[%c0, %c0_0] : memref<32x256xbf16, #tpu.memory_space<vmem>>, vector<32x256xbf16>
    %c0_1 = arith.constant 0 : index
    %c0_2 = arith.constant 0 : index
    %1 = vector.load %arg2[%c0_1, %c0_2] : memref<256x128xbf16, #tpu.memory_space<vmem>>, vector<256x128xbf16>
    %cst = arith.constant dense<0.000000e+00> : vector<32x128xf32>
    %2 = tpu.matmul %0, %1, %cst {dimension_numbers = #tpu.dot_dimension_numbers<[1], [0], [0], [1], [0, 0, 1, 1], [], []>} : vector<32x256xbf16>, vector<256x128xbf16>, vector<32x128xf32> -> vector<32x128xf32>
    %c0_3 = arith.constant 0 : index
    %c0_4 = arith.constant 0 : index
    %3 = vector.load %arg3[%c0_3, %c0_4] : memref<1x128xf32, #tpu.memory_space<vmem>>, vector<1x128xf32>
    %4 = vector.broadcast %3 : vector<1x128xf32> to vector<32x128xf32>
    %5 = arith.addf %2, %4 : vector<32x128xf32>
    %cst_5 = arith.constant 0.000000e+00 : f32
    %6 = vector.broadcast %cst_5 : f32 to vector<32x128xf32>
    %7 = arith.maximumf %5, %6 : vector<32x128xf32>
    %c0_6 = arith.constant 0 : index
    %c0_7 = arith.constant 0 : index
    %8 = vector.load %arg4[%c0_6, %c0_7] : memref<32x128xf32, #tpu.memory_space<vmem>>, vector<32x128xf32>
    tpu.vector_store %arg4[%c0_6, %c0_7], %7 {strides = array<i32>} : memref<32x128xf32, #tpu.memory_space<vmem>>, vector<32x128xf32>,
    return
  }
  func.func @transform_0(%arg0: i32) -> (i32, i32) {
    %c0_i32 = arith.constant 0 : i32
    %c0_i32_0 = arith.constant 0 : i32
    return %arg0, %c0_i32 : i32, i32
  }
  func.func @transform_1(%arg0: i32) -> (i32, i32) {
    %c0_i32 = arith.constant 0 : i32
    %c0_i32_0 = arith.constant 0 : i32
    %c0_i32_1 = arith.constant 0 : i32
    return %c0_i32, %c0_i32_0 : i32, i32
  }
  func.func @transform_2(%arg0: i32) -> (i32, i32) {
    %c0_i32 = arith.constant 0 : i32
    %c0_i32_0 = arith.constant 0 : i32
    %c0_i32_1 = arith.constant 0 : i32
    return %c0_i32, %c0_i32_0 : i32, i32
  }
  func.func @transform_3(%arg0: i32) -> (i32, i32) {
    %c0_i32 = arith.constant 0 : i32
    %c0_i32_0 = arith.constant 0 : i32
    return %arg0, %c0_i32 : i32, i32
  }
}

module attributes {stable_mosaic.version = 11 : i64} {
  func.func @kernel(%arg0: i32, %arg1: memref<32x288xbf16, #tpu.memory_space<vmem>>, %arg2: memref<288x128xbf16, #tpu.memory_space<vmem>>, %arg3: memref<1x128xf32, #tpu.memory_space<vmem>>, %arg4: memref<32x128xf32, #tpu.memory_space<vmem>>) attributes {dimension_semantics = [#tpu.dimension_semantics<parallel>], iteration_bounds = array<i64: 1>, scalar_prefetch = 0 : i64, scratch_operands = 0 : i64, tpu.core_type = #tpu.core_type<tc>, window_params = [{transform_indices = @transform_0, window_bounds = array<i64: 32, 288>}, {pipeline_mode = #tpu.pipeline_mode<synchronous>, transform_indices = @transform_1, window_bounds = array<i64: 288, 128>}, {pipeline_mode = #tpu.pipeline_mode<synchronous>, transform_indices = @transform_2, window_bounds = array<i64: 1, 128>}, {transform_indices = @transform_3, window_bounds = array<i64: 32, 128>}]} {
    %c0 = arith.constant 0 : index
    %c0_0 = arith.constant 0 : index
    %0 = vector.load %arg1[%c0, %c0_0] : memref<32x288xbf16, #tpu.memory_space<vmem>>, vector<32x288xbf16>
    %c0_1 = arith.constant 0 : index
    %c0_2 = arith.constant 0 : index
    %1 = vector.load %arg2[%c0_1, %c0_2] : memref<288x128xbf16, #tpu.memory_space<vmem>>, vector<288x128xbf16>
    %cst = arith.constant dense<0.000000e+00> : vector<32x128xf32>
    %2 = tpu.matmul %0, %1, %cst {dimension_numbers = #tpu.dot_dimension_numbers<[1], [0], [0], [1], [0, 0, 1, 1], [], []>} : vector<32x288xbf16>, vector<288x128xbf16>, vector<32x128xf32> -> vector<32x128xf32>
    %c0_3 = arith.constant 0 : index
    %c0_4 = arith.constant 0 : index
    %3 = vector.load %arg3[%c0_3, %c0_4] : memref<1x128xf32, #tpu.memory_space<vmem>>, vector<1x128xf32>
    %4 = vector.broadcast %3 : vector<1x128xf32> to vector<32x128xf32>
    %5 = arith.addf %2, %4 : vector<32x128xf32>
    %c0_5 = arith.constant 0 : index
    %c0_6 = arith.constant 0 : index
    %6 = vector.load %arg4[%c0_5, %c0_6] : memref<32x128xf32, #tpu.memory_space<vmem>>, vector<32x128xf32>
    tpu.vector_store %arg4[%c0_5, %c0_6], %5 {strides = array<i32>} : memref<32x128xf32, #tpu.memory_space<vmem>>, vector<32x128xf32>,
    return
  }
  func.func @transform_0(%arg0: i32) -> (i32, i32) {
    %c0_i32 = arith.constant 0 : i32
    %c0_i32_0 = arith.constant 0 : i32
    return %arg0, %c0_i32 : i32, i32
  }
  func.func @transform_1(%arg0: i32) -> (i32, i32) {
    %c0_i32 = arith.constant 0 : i32
    %c0_i32_0 = arith.constant 0 : i32
    %c0_i32_1 = arith.constant 0 : i32
    return %c0_i32, %c0_i32_0 : i32, i32
  }
  func.func @transform_2(%arg0: i32) -> (i32, i32) {
    %c0_i32 = arith.constant 0 : i32
    %c0_i32_0 = arith.constant 0 : i32
    %c0_i32_1 = arith.constant 0 : i32
    return %c0_i32, %c0_i32_0 : i32, i32
  }
  func.func @transform_3(%arg0: i32) -> (i32, i32) {
    %c0_i32 = arith.constant 0 : i32
    %c0_i32_0 = arith.constant 0 : i32
    return %arg0, %c0_i32 : i32, i32
  }
}

module attributes {stable_mosaic.version = 11 : i64} {
  func.func @kernel(%arg0: i32, %arg1: memref<32x1152xbf16, #tpu.memory_space<vmem>>, %arg2: memref<1152x16xbf16, #tpu.memory_space<vmem>>, %arg3: memref<16x128xbf16, #tpu.memory_space<vmem>>, %arg4: memref<32x128xf32, #tpu.memory_space<vmem>>, %arg5: memref<32x128xf32, #tpu.memory_space<vmem>>) attributes {dimension_semantics = [#tpu.dimension_semantics<parallel>], iteration_bounds = array<i64: 1>, scalar_prefetch = 0 : i64, scratch_operands = 0 : i64, tpu.core_type = #tpu.core_type<tc>, window_params = [{transform_indices = @transform_0, window_bounds = array<i64: 32, 1152>}, {pipeline_mode = #tpu.pipeline_mode<synchronous>, transform_indices = @transform_1, window_bounds = array<i64: 1152, 16>}, {pipeline_mode = #tpu.pipeline_mode<synchronous>, transform_indices = @transform_2, window_bounds = array<i64: 16, 128>}, {transform_indices = @transform_3, window_bounds = array<i64: 32, 128>}, {transform_indices = @transform_4, window_bounds = array<i64: 32, 128>}]} {
    %c0 = arith.constant 0 : index
    %c0_0 = arith.constant 0 : index
    %0 = vector.load %arg1[%c0, %c0_0] : memref<32x1152xbf16, #tpu.memory_space<vmem>>, vector<32x1152xbf16>
    %c0_1 = arith.constant 0 : index
    %c0_2 = arith.constant 0 : index
    %1 = vector.load %arg2[%c0_1, %c0_2] : memref<1152x16xbf16, #tpu.memory_space<vmem>>, vector<1152x16xbf16>
    %cst = arith.constant dense<0.000000e+00> : vector<32x16xf32>
    %2 = tpu.matmul %0, %1, %cst {dimension_numbers = #tpu.dot_dimension_numbers<[1], [0], [0], [1], [0, 0, 1, 1], [], []>} : vector<32x1152xbf16>, vector<1152x16xbf16>, vector<32x16xf32> -> vector<32x16xf32>
    %cst_3 = arith.constant 0.000000e+00 : f32
    %3 = vector.broadcast %cst_3 : f32 to vector<32x16xf32>
    %4 = arith.maximumf %2, %3 : vector<32x16xf32>
    %c0_4 = arith.constant 0 : index
    %c0_5 = arith.constant 0 : index
    %5 = vector.load %arg4[%c0_4, %c0_5] : memref<32x128xf32, #tpu.memory_space<vmem>>, vector<32x128xf32>
    %6 = arith.truncf %4 : vector<32x16xf32> to vector<32x16xbf16>
    %c0_6 = arith.constant 0 : index
    %c0_7 = arith.constant 0 : index
    %7 = vector.load %arg3[%c0_6, %c0_7] : memref<16x128xbf16, #tpu.memory_space<vmem>>, vector<16x128xbf16>
    %cst_8 = arith.constant dense<0.000000e+00> : vector<32x128xf32>
    %8 = tpu.matmul %6, %7, %cst_8 {dimension_numbers = #tpu.dot_dimension_numbers<[1], [0], [0], [1], [0, 0, 1, 1], [], []>} : vector<32x16xbf16>, vector<16x128xbf16>, vector<32x128xf32> -> vector<32x128xf32>
    %9 = arith.addf %5, %8 : vector<32x128xf32>
    %cst_9 = arith.constant 0.000000e+00 : f32
    %10 = vector.broadcast %cst_9 : f32 to vector<32x128xf32>
    %11 = arith.maximumf %9, %10 : vector<32x128xf32>
    %c0_10 = arith.constant 0 : index
    %c0_11 = arith.constant 0 : index
    %12 = vector.load %arg5[%c0_10, %c0_11] : memref<32x128xf32, #tpu.memory_space<vmem>>, vector<32x128xf32>
    tpu.vector_store %arg5[%c0_10, %c0_11], %11 {strides = array<i32>} : memref<32x128xf32, #tpu.memory_space<vmem>>, vector<32x128xf32>,
    return
  }
  func.func @transform_0(%arg0: i32) -> (i32, i32) {
    %c0_i32 = arith.constant 0 : i32
    %c0_i32_0 = arith.constant 0 : i32
    return %arg0, %c0_i32 : i32, i32
  }
  func.func @transform_1(%arg0: i32) -> (i32, i32) {
    %c0_i32 = arith.constant 0 : i32
    %c0_i32_0 = arith.constant 0 : i32
    %c0_i32_1 = arith.constant 0 : i32
    return %c0_i32, %c0_i32_0 : i32, i32
  }
  func.func @transform_2(%arg0: i32) -> (i32, i32) {
    %c0_i32 = arith.constant 0 : i32
    %c0_i32_0 = arith.constant 0 : i32
    %c0_i32_1 = arith.constant 0 : i32
    return %c0_i32, %c0_i32_0 : i32, i32
  }
  func.func @transform_3(%arg0: i32) -> (i32, i32) {
    %c0_i32 = arith.constant 0 : i32
    %c0_i32_0 = arith.constant 0 : i32
    return %arg0, %c0_i32 : i32, i32
  }
  func.func @transform_4(%arg0: i32) -> (i32, i32) {
    %c0_i32 = arith.constant 0 : i32
    %c0_i32_0 = arith.constant 0 : i32
    return %arg0, %c0_i32 : i32, i32
  }
}

module attributes {stable_mosaic.version = 11 : i64} {
  func.func @kernel(%arg0: i32, %arg1: memref<32x1152xbf16, #tpu.memory_space<vmem>>, %arg2: memref<1152x16xbf16, #tpu.memory_space<vmem>>, %arg3: memref<16x128xbf16, #tpu.memory_space<vmem>>, %arg4: memref<32x128xf32, #tpu.memory_space<vmem>>, %arg5: memref<32x128xf32, #tpu.memory_space<vmem>>) attributes {dimension_semantics = [#tpu.dimension_semantics<parallel>], iteration_bounds = array<i64: 1>, scalar_prefetch = 0 : i64, scratch_operands = 0 : i64, tpu.core_type = #tpu.core_type<tc>, window_params = [{transform_indices = @transform_0, window_bounds = array<i64: 32, 1152>}, {pipeline_mode = #tpu.pipeline_mode<synchronous>, transform_indices = @transform_1, window_bounds = array<i64: 1152, 16>}, {pipeline_mode = #tpu.pipeline_mode<synchronous>, transform_indices = @transform_2, window_bounds = array<i64: 16, 128>}, {transform_indices = @transform_3, window_bounds = array<i64: 32, 128>}, {transform_indices = @transform_4, window_bounds = array<i64: 32, 128>}]} {
    %c0 = arith.constant 0 : index
    %c0_0 = arith.constant 0 : index
    %0 = vector.load %arg1[%c0, %c0_0] : memref<32x1152xbf16, #tpu.memory_space<vmem>>, vector<32x1152xbf16>
    %c0_1 = arith.constant 0 : index
    %c0_2 = arith.constant 0 : index
    %1 = vector.load %arg2[%c0_1, %c0_2] : memref<1152x16xbf16, #tpu.memory_space<vmem>>, vector<1152x16xbf16>
    %cst = arith.constant dense<0.000000e+00> : vector<32x16xf32>
    %2 = tpu.matmul %0, %1, %cst {dimension_numbers = #tpu.dot_dimension_numbers<[1], [0], [0], [1], [0, 0, 1, 1], [], []>} : vector<32x1152xbf16>, vector<1152x16xbf16>, vector<32x16xf32> -> vector<32x16xf32>
    %cst_3 = arith.constant 0.000000e+00 : f32
    %3 = vector.broadcast %cst_3 : f32 to vector<32x16xf32>
    %4 = arith.maximumf %2, %3 : vector<32x16xf32>
    %c0_4 = arith.constant 0 : index
    %c0_5 = arith.constant 0 : index
    %5 = vector.load %arg4[%c0_4, %c0_5] : memref<32x128xf32, #tpu.memory_space<vmem>>, vector<32x128xf32>
    %6 = arith.truncf %4 : vector<32x16xf32> to vector<32x16xbf16>
    %c0_6 = arith.constant 0 : index
    %c0_7 = arith.constant 0 : index
    %7 = vector.load %arg3[%c0_6, %c0_7] : memref<16x128xbf16, #tpu.memory_space<vmem>>, vector<16x128xbf16>
    %cst_8 = arith.constant dense<0.000000e+00> : vector<32x128xf32>
    %8 = tpu.matmul %6, %7, %cst_8 {dimension_numbers = #tpu.dot_dimension_numbers<[1], [0], [0], [1], [0, 0, 1, 1], [], []>} : vector<32x16xbf16>, vector<16x128xbf16>, vector<32x128xf32> -> vector<32x128xf32>
    %9 = arith.addf %5, %8 : vector<32x128xf32>
    %c0_9 = arith.constant 0 : index
    %c0_10 = arith.constant 0 : index
    %10 = vector.load %arg5[%c0_9, %c0_10] : memref<32x128xf32, #tpu.memory_space<vmem>>, vector<32x128xf32>
    tpu.vector_store %arg5[%c0_9, %c0_10], %9 {strides = array<i32>} : memref<32x128xf32, #tpu.memory_space<vmem>>, vector<32x128xf32>,
    return
  }
  func.func @transform_0(%arg0: i32) -> (i32, i32) {
    %c0_i32 = arith.constant 0 : i32
    %c0_i32_0 = arith.constant 0 : i32
    return %arg0, %c0_i32 : i32, i32
  }
  func.func @transform_1(%arg0: i32) -> (i32, i32) {
    %c0_i32 = arith.constant 0 : i32
    %c0_i32_0 = arith.constant 0 : i32
    %c0_i32_1 = arith.constant 0 : i32
    return %c0_i32, %c0_i32_0 : i32, i32
  }
  func.func @transform_2(%arg0: i32) -> (i32, i32) {
    %c0_i32 = arith.constant 0 : i32
    %c0_i32_0 = arith.constant 0 : i32
    %c0_i32_1 = arith.constant 0 : i32
    return %c0_i32, %c0_i32_0 : i32, i32
  }
  func.func @transform_3(%arg0: i32) -> (i32, i32) {
    %c0_i32 = arith.constant 0 : i32
    %c0_i32_0 = arith.constant 0 : i32
    return %arg0, %c0_i32 : i32, i32
  }
  func.func @transform_4(%arg0: i32) -> (i32, i32) {
    %c0_i32 = arith.constant 0 : i32
    %c0_i32_0 = arith.constant 0 : i32
    return %arg0, %c0_i32 : i32, i32
  }
}

</mosaic_0001>

<llo_original>
// kernel: encoder_bot_forward.5
$region0: #{encoder_bot_forward.5}
  #allocation0 [shape = 'u32[]', space=smem, size = 0x4, offset = 0x4, fixed_abs, tag = 'smem constant byte address 0x4 - core index']
  #allocation1 [shape = 'u32[72,128]{1,0:T(1,128)}', space=vmem, size = 0x9000, scoped, tag = 'internal scratch']
  %s0 = inlined_call_operand.vmem [shape: bf16[128,64], index: 0, kind: input, shape index: {}]
  %s1 = inlined_call_operand.vmem [shape: bf16[64,128], index: 1, kind: input, shape index: {}]
  %s2 = inlined_call_operand.vmem [shape: f32[1,128], index: 2, kind: input, shape index: {}]
  %s3 = inlined_call_operand.vmem [shape: f32[128,128], index: 3, kind: output, shape index: {}]
  %s4 = sld [smem:[#allocation0]]
  $region22: #{encoder_bot_forward.5} parent=0
    _
  %s6 = ssub.s32 1, %s4
  %s7 = scalar_select 0, %s6, %s4
  // Predicated region
  $region2: #{encoder_bot_forward.5} parent=0 // pred_check
    _
  $region3: #{encoder_bot_forward.5} parent=0 // pred_check_branch
    %9 = sbr.rel (0) target = $region5
  $region4: #{encoder_bot_forward.5} parent=0 // pred_region
    _
  $region5: #{encoder_bot_forward.5} parent=0 // pred_fallthru
    _
  // Predicated region
  $region6: #{encoder_bot_forward.5} parent=0 // pred_check
    _
  $region7: #{encoder_bot_forward.5} parent=0 // pred_check_branch
    %11 = sbr.rel (0) target = $region9
  $region8: #{encoder_bot_forward.5} parent=0 // pred_region
    _
  $region9: #{encoder_bot_forward.5} parent=0 // pred_fallthru
    _
  // Predicated region
  $region10: #{encoder_bot_forward.5} parent=0 // pred_check
    _
  $region11: #{encoder_bot_forward.5} parent=0 // pred_check_branch
    %13 = sbr.rel (0) target = $region13
  $region12: #{encoder_bot_forward.5} parent=0 // pred_region
    _
  $region13: #{encoder_bot_forward.5} parent=0 // pred_fallthru
    _
  %v15 = vld [vmem:[%s0] sm:$0xf]
  %v16 = vld [vmem:[%s0 + $0x4] sm:$0xf]
  %v17 = vld [vmem:[%s0 + $0x8] sm:$0xf]
  %v18 = vld [vmem:[%s0 + $0xc] sm:$0xf]
  %v19 = vld [vmem:[%s0 + $0x10] sm:$0xf]
  %v20 = vld [vmem:[%s0 + $0x14] sm:$0xf]
  %v21 = vld [vmem:[%s0 + $0x18] sm:$0xf]
  %v22 = vld [vmem:[%s0 + $0x1c] sm:$0xf]
  %v23 = vld [vmem:[%s0 + $0x20] sm:$0xf]
  %v24 = vld [vmem:[%s0 + $0x24] sm:$0xf]
  %v25 = vld [vmem:[%s0 + $0x28] sm:$0xf]
  %v26 = vld [vmem:[%s0 + $0x2c] sm:$0xf]
  %v27 = vld [vmem:[%s0 + $0x30] sm:$0xf]
  %v28 = vld [vmem:[%s0 + $0x34] sm:$0xf]
  %v29 = vld [vmem:[%s0 + $0x38] sm:$0xf]
  %v30 = vld [vmem:[%s0 + $0x3c] sm:$0xf]
  %v31 = vld [vmem:[%s1] sm:$0xf]
  %v32 = vld [vmem:[%s1 + $0x4] sm:$0xf]
  %v33 = vld [vmem:[%s1 + $0x8] sm:$0xf]
  %v34 = vld [vmem:[%s1 + $0xc] sm:$0xf]
  %v35 = vld [vmem:[%s1 + $0x10] sm:$0xf]
  %v36 = vld [vmem:[%s1 + $0x14] sm:$0xf]
  %v37 = vld [vmem:[%s1 + $0x18] sm:$0xf]
  %v38 = vld [vmem:[%s1 + $0x1c] sm:$0xf]
  %v39 = vld [vmem:[%s2] sm:$0x1]
  %v41 = vperm.slane %v39, 0
  %v59 = vunpack.c.l.b16 %v15
  %v60 = vunpack.c.l.b16 %v16
  %v61 = vunpack.c.l.b16 %v17
  %v62 = vunpack.c.l.b16 %v18
  %v63 = vunpack.c.l.b16 %v19
  %v64 = vunpack.c.l.b16 %v20
  %v65 = vunpack.c.l.b16 %v21
  %v66 = vunpack.c.l.b16 %v22
  %v67 = vunpack.c.l.b16 %v23
  %v68 = vunpack.c.l.b16 %v24
  %v69 = vunpack.c.l.b16 %v25
  %v70 = vunpack.c.l.b16 %v26
  %v71 = vunpack.c.l.b16 %v27
  %v72 = vunpack.c.l.b16 %v28
  %v73 = vunpack.c.l.b16 %v29
  %v74 = vunpack.c.l.b16 %v30
  %v75 = vpack.c.b16 %v60, %v59
  %v76 = vpack.c.b16 %v62, %v61
  %v77 = vpack.c.b16 %v64, %v63
  %v78 = vpack.c.b16 %v66, %v65
  %v79 = vpack.c.b16 %v68, %v67
  %v80 = vpack.c.b16 %v70, %v69
  %v81 = vpack.c.b16 %v72, %v71
  %v82 = vpack.c.b16 %v74, %v73
  %v91 = vunpack.c.l.b16 %v31
  %v92 = vunpack.c.l.b16 %v32
  %v93 = vunpack.c.l.b16 %v33
  %v94 = vunpack.c.l.b16 %v34
  %v95 = vunpack.c.l.b16 %v35
  %v96 = vunpack.c.l.b16 %v36
  %v97 = vunpack.c.l.b16 %v37
  %v98 = vunpack.c.l.b16 %v38
  %v99 = vpack.c.b16 %v92, %v91
  %v100 = vpack.c.b16 %v94, %v93
  %v101 = vpack.c.b16 %v96, %v95
  %v102 = vpack.c.b16 %v98, %v97
  %vm107 = vcmask 523264
  %v109 = vsel %vm107, %v75, 0
  %v112 = vsel %vm107, %v76, 0
  %v115 = vsel %vm107, %v77, 0
  %v118 = vsel %vm107, %v78, 0
  %v121 = vsel %vm107, %v79, 0
  %v124 = vsel %vm107, %v80, 0
  %v127 = vsel %vm107, %v81, 0
  %v130 = vsel %vm107, %v82, 0
  %132 = vmatpush.bf16.msra.mxu0 0
  %133 = vmatpush.bf16.msra.mxu0 0
  %134 = vmatpush.bf16.msra.mxu0 0
  %135 = vmatpush.bf16.msra.mxu0 0
  %136 = vmatpush.bf16.msra.mxu0 %v102
  %137 = vmatpush.bf16.msra.mxu0 %v101
  %138 = vmatpush.bf16.msra.mxu0 %v100
  %139 = vmatpush.bf16.msra.mxu0 %v99
  %140 = vmatmul.bf16.gmra.mxu0 %v109
  %v141 = vpop.f32.mrf.mxu0
  %v142 = vadd.f32 %v41, %v141
  %v143 = vpop.f32.mrf.mxu0
  %v144 = vadd.f32 %v41, %v143
  %145 = vmatmul.bf16.gmra.mxu0 %v112
  %v146 = vpop.f32.mrf.mxu0
  %v147 = vadd.f32 %v41, %v146
  %v148 = vpop.f32.mrf.mxu0
  %v149 = vadd.f32 %v41, %v148
  %150 = vmatmul.bf16.gmra.mxu0 %v115
  %v151 = vpop.f32.mrf.mxu0
  %v152 = vadd.f32 %v41, %v151
  %v153 = vpop.f32.mrf.mxu0
  %v154 = vadd.f32 %v41, %v153
  %155 = vmatmul.bf16.gmra.mxu0 %v118
  %v156 = vpop.f32.mrf.mxu0
  %v157 = vadd.f32 %v41, %v156
  %v158 = vpop.f32.mrf.mxu0
  %v159 = vadd.f32 %v41, %v158
  %160 = vmatmul.bf16.gmra.mxu0 %v121
  %v161 = vpop.f32.mrf.mxu0
  %v162 = vadd.f32 %v41, %v161
  %v163 = vpop.f32.mrf.mxu0
  %v164 = vadd.f32 %v41, %v163
  %165 = vmatmul.bf16.gmra.mxu0 %v124
  %v166 = vpop.f32.mrf.mxu0
  %v167 = vadd.f32 %v41, %v166
  %v168 = vpop.f32.mrf.mxu0
  %v169 = vadd.f32 %v41, %v168
  %170 = vmatmul.bf16.gmra.mxu0 %v127
  %v171 = vpop.f32.mrf.mxu0
  %v172 = vadd.f32 %v41, %v171
  %v173 = vpop.f32.mrf.mxu0
  %v174 = vadd.f32 %v41, %v173
  %175 = vmatmul.bf16.gmra.mxu0 %v130
  %v176 = vpop.f32.mrf.mxu0
  %v177 = vadd.f32 %v41, %v176
  %v178 = vpop.f32.mrf.mxu0
  %v179 = vadd.f32 %v41, %v178
  %180 = vdwg.mxu0
  %v181 = vmax.f32 %v142, 0.0
  %v182 = vmax.f32 %v144, 0.0
  %v183 = vmax.f32 %v147, 0.0
  %v184 = vmax.f32 %v149, 0.0
  %v185 = vmax.f32 %v152, 0.0
  %v186 = vmax.f32 %v154, 0.0
  %v187 = vmax.f32 %v157, 0.0
  %v188 = vmax.f32 %v159, 0.0
  %v189 = vmax.f32 %v162, 0.0
  %v190 = vmax.f32 %v164, 0.0
  %v191 = vmax.f32 %v167, 0.0
  %v192 = vmax.f32 %v169, 0.0
  %v193 = vmax.f32 %v172, 0.0
  %v194 = vmax.f32 %v174, 0.0
  %v195 = vmax.f32 %v177, 0.0
  %v196 = vmax.f32 %v179, 0.0
  %197 = vst [vmem:[%s3] sm:$0xff] %v181
  %198 = vst [vmem:[%s3 + $0x8] sm:$0xff] %v182
  %199 = vst [vmem:[%s3 + $0x10] sm:$0xff] %v183
  %200 = vst [vmem:[%s3 + $0x18] sm:$0xff] %v184
  %201 = vst [vmem:[%s3 + $0x20] sm:$0xff] %v185
  %202 = vst [vmem:[%s3 + $0x28] sm:$0xff] %v186
  %203 = vst [vmem:[%s3 + $0x30] sm:$0xff] %v187
  %204 = vst [vmem:[%s3 + $0x38] sm:$0xff] %v188
  %205 = vst [vmem:[%s3 + $0x40] sm:$0xff] %v189
  %206 = vst [vmem:[%s3 + $0x48] sm:$0xff] %v190
  %207 = vst [vmem:[%s3 + $0x50] sm:$0xff] %v191
  %208 = vst [vmem:[%s3 + $0x58] sm:$0xff] %v192
  %209 = vst [vmem:[%s3 + $0x60] sm:$0xff] %v193
  %210 = vst [vmem:[%s3 + $0x68] sm:$0xff] %v194
  %211 = vst [vmem:[%s3 + $0x70] sm:$0xff] %v195
  %212 = vst [vmem:[%s3 + $0x78] sm:$0xff] %v196
  // Predicated region
  $region14: #{encoder_bot_forward.5} parent=0 // pred_check
    _
  $region15: #{encoder_bot_forward.5} parent=0 // pred_check_branch
    %214 = sbr.rel (0) target = $region17
  $region16: #{encoder_bot_forward.5} parent=0 // pred_region
    _
  $region17: #{encoder_bot_forward.5} parent=0 // pred_fallthru
    _
  // Predicated region
  $region18: #{encoder_bot_forward.5} parent=0 // pred_check
    _
  $region19: #{encoder_bot_forward.5} parent=0 // pred_check_branch
    %216 = sbr.rel (0) target = $region21
  $region20: #{encoder_bot_forward.5} parent=0 // pred_region
    _
  $region21: #{encoder_bot_forward.5} parent=0 // pred_fallthru
    _

// kernel: encoder_bot_forward.6
$region0: #{encoder_bot_forward.6}
  #allocation0 [shape = 'u32[]', space=smem, size = 0x4, offset = 0x4, fixed_abs, tag = 'smem constant byte address 0x4 - core index']
  #allocation1 [shape = 'u32[72,128]{1,0:T(1,128)}', space=vmem, size = 0x9000, scoped, tag = 'internal scratch']
  %s0 = inlined_call_operand.vmem [shape: bf16[32,256], index: 0, kind: input, shape index: {}]
  %s1 = inlined_call_operand.vmem [shape: bf16[256,128], index: 1, kind: input, shape index: {}]
  %s2 = inlined_call_operand.vmem [shape: f32[1,128], index: 2, kind: input, shape index: {}]
  %s3 = inlined_call_operand.vmem [shape: f32[32,128], index: 3, kind: output, shape index: {}]
  %s4 = sld [smem:[#allocation0]]
  $region22: #{encoder_bot_forward.6} parent=0
    _
  %s6 = ssub.s32 1, %s4
  %s7 = scalar_select 0, %s6, %s4
  // Predicated region
  $region2: #{encoder_bot_forward.6} parent=0 // pred_check
    _
  $region3: #{encoder_bot_forward.6} parent=0 // pred_check_branch
    %9 = sbr.rel (0) target = $region5
  $region4: #{encoder_bot_forward.6} parent=0 // pred_region
    _
  $region5: #{encoder_bot_forward.6} parent=0 // pred_fallthru
    _
  // Predicated region
  $region6: #{encoder_bot_forward.6} parent=0 // pred_check
    _
  $region7: #{encoder_bot_forward.6} parent=0 // pred_check_branch
    %11 = sbr.rel (0) target = $region9
  $region8: #{encoder_bot_forward.6} parent=0 // pred_region
    _
  $region9: #{encoder_bot_forward.6} parent=0 // pred_fallthru
    _
  // Predicated region
  $region10: #{encoder_bot_forward.6} parent=0 // pred_check
    _
  $region11: #{encoder_bot_forward.6} parent=0 // pred_check_branch
    %13 = sbr.rel (0) target = $region13
  $region12: #{encoder_bot_forward.6} parent=0 // pred_region
    _
  $region13: #{encoder_bot_forward.6} parent=0 // pred_fallthru
    _
  %v14 = vld [vmem:[%s0] sm:$0xff]
  %v15 = vld [vmem:[%s0 + $0x8] sm:$0xff]
  %v16 = vld [vmem:[%s0 + $0x10] sm:$0xff]
  %v17 = vld [vmem:[%s0 + $0x18] sm:$0xff]
  %v18 = vld [vmem:[%s1] sm:$0xf]
  %v19 = vld [vmem:[%s1 + $0x4] sm:$0xf]
  %v20 = vld [vmem:[%s1 + $0x8] sm:$0xf]
  %v21 = vld [vmem:[%s1 + $0xc] sm:$0xf]
  %v22 = vld [vmem:[%s1 + $0x10] sm:$0xf]
  %v23 = vld [vmem:[%s1 + $0x14] sm:$0xf]
  %v24 = vld [vmem:[%s1 + $0x18] sm:$0xf]
  %v25 = vld [vmem:[%s1 + $0x1c] sm:$0xf]
  %v26 = vld [vmem:[%s1 + $0x20] sm:$0xf]
  %v27 = vld [vmem:[%s1 + $0x24] sm:$0xf]
  %v28 = vld [vmem:[%s1 + $0x28] sm:$0xf]
  %v29 = vld [vmem:[%s1 + $0x2c] sm:$0xf]
  %v30 = vld [vmem:[%s1 + $0x30] sm:$0xf]
  %v31 = vld [vmem:[%s1 + $0x34] sm:$0xf]
  %v32 = vld [vmem:[%s1 + $0x38] sm:$0xf]
  %v33 = vld [vmem:[%s1 + $0x3c] sm:$0xf]
  %v34 = vld [vmem:[%s1 + $0x40] sm:$0xf]
  %v35 = vld [vmem:[%s1 + $0x44] sm:$0xf]
  %v36 = vld [vmem:[%s1 + $0x48] sm:$0xf]
  %v37 = vld [vmem:[%s1 + $0x4c] sm:$0xf]
  %v38 = vld [vmem:[%s1 + $0x50] sm:$0xf]
  %v39 = vld [vmem:[%s1 + $0x54] sm:$0xf]
  %v40 = vld [vmem:[%s1 + $0x58] sm:$0xf]
  %v41 = vld [vmem:[%s1 + $0x5c] sm:$0xf]
  %v42 = vld [vmem:[%s1 + $0x60] sm:$0xf]
  %v43 = vld [vmem:[%s1 + $0x64] sm:$0xf]
  %v44 = vld [vmem:[%s1 + $0x68] sm:$0xf]
  %v45 = vld [vmem:[%s1 + $0x6c] sm:$0xf]
  %v46 = vld [vmem:[%s1 + $0x70] sm:$0xf]
  %v47 = vld [vmem:[%s1 + $0x74] sm:$0xf]
  %v48 = vld [vmem:[%s1 + $0x78] sm:$0xf]
  %v49 = vld [vmem:[%s1 + $0x7c] sm:$0xf]
  %v50 = vld [vmem:[%s2] sm:$0x1]
  %v52 = vperm.slane %v50, 0
  %v58 = vunpack.c.l.b16 %v14
  %v59 = vunpack.c.h.b16 %v14
  %v60 = vunpack.c.l.b16 %v15
  %v61 = vunpack.c.h.b16 %v15
  %v62 = vunpack.c.l.b16 %v16
  %v63 = vunpack.c.h.b16 %v16
  %v64 = vunpack.c.l.b16 %v17
  %v65 = vunpack.c.h.b16 %v17
  %v66 = vpack.c.b16 %v60, %v58
  %v67 = vpack.c.b16 %v61, %v59
  %v68 = vpack.c.b16 %v64, %v62
  %v69 = vpack.c.b16 %v65, %v63
  %v106 = vunpack.c.l.b16 %v18
  %v107 = vunpack.c.l.b16 %v19
  %v108 = vunpack.c.l.b16 %v20
  %v109 = vunpack.c.l.b16 %v21
  %v110 = vunpack.c.l.b16 %v22
  %v111 = vunpack.c.l.b16 %v23
  %v112 = vunpack.c.l.b16 %v24
  %v113 = vunpack.c.l.b16 %v25
  %v114 = vunpack.c.l.b16 %v26
  %v115 = vunpack.c.l.b16 %v27
  %v116 = vunpack.c.l.b16 %v28
  %v117 = vunpack.c.l.b16 %v29
  %v118 = vunpack.c.l.b16 %v30
  %v119 = vunpack.c.l.b16 %v31
  %v120 = vunpack.c.l.b16 %v32
  %v121 = vunpack.c.l.b16 %v33
  %v122 = vunpack.c.l.b16 %v34
  %v123 = vunpack.c.l.b16 %v35
  %v124 = vunpack.c.l.b16 %v36
  %v125 = vunpack.c.l.b16 %v37
  %v126 = vunpack.c.l.b16 %v38
  %v127 = vunpack.c.l.b16 %v39
  %v128 = vunpack.c.l.b16 %v40
  %v129 = vunpack.c.l.b16 %v41
  %v130 = vunpack.c.l.b16 %v42
  %v131 = vunpack.c.l.b16 %v43
  %v132 = vunpack.c.l.b16 %v44
  %v133 = vunpack.c.l.b16 %v45
  %v134 = vunpack.c.l.b16 %v46
  %v135 = vunpack.c.l.b16 %v47
  %v136 = vunpack.c.l.b16 %v48
  %v137 = vunpack.c.l.b16 %v49
  %v138 = vpack.c.b16 %v107, %v106
  %v139 = vpack.c.b16 %v109, %v108
  %v140 = vpack.c.b16 %v111, %v110
  %v141 = vpack.c.b16 %v113, %v112
  %v142 = vpack.c.b16 %v115, %v114
  %v143 = vpack.c.b16 %v117, %v116
  %v144 = vpack.c.b16 %v119, %v118
  %v145 = vpack.c.b16 %v121, %v120
  %v146 = vpack.c.b16 %v123, %v122
  %v147 = vpack.c.b16 %v125, %v124
  %v148 = vpack.c.b16 %v127, %v126
  %v149 = vpack.c.b16 %v129, %v128
  %v150 = vpack.c.b16 %v131, %v130
  %v151 = vpack.c.b16 %v133, %v132
  %v152 = vpack.c.b16 %v135, %v134
  %v153 = vpack.c.b16 %v137, %v136
  %170 = vmatpush.bf16.msra.mxu0 %v145
  %171 = vmatpush.bf16.msra.mxu0 %v144
  %172 = vmatpush.bf16.msra.mxu0 %v143
  %173 = vmatpush.bf16.msra.mxu0 %v142
  %174 = vmatpush.bf16.msra.mxu0 %v141
  %175 = vmatpush.bf16.msra.mxu0 %v140
  %176 = vmatpush.bf16.msra.mxu0 %v139
  %177 = vmatpush.bf16.msra.mxu0 %v138
  %178 = vmatmul.bf16.gmra.mxu0 %v66
  %v179 = vpop.f32.mrf.mxu0
  %v180 = vadd.f32 %v52, %v179
  %v181 = vpop.f32.mrf.mxu0
  %v182 = vadd.f32 %v52, %v181
  %183 = vmatmul.bf16.gmra.mxu0 %v68
  %v184 = vpop.f32.mrf.mxu0
  %v185 = vadd.f32 %v52, %v184
  %v186 = vpop.f32.mrf.mxu0
  %v187 = vadd.f32 %v52, %v186
  %188 = vdwg.mxu0
  %189 = vmatpush.bf16.msra.mxu0 %v153
  %190 = vmatpush.bf16.msra.mxu0 %v152
  %191 = vmatpush.bf16.msra.mxu0 %v151
  %192 = vmatpush.bf16.msra.mxu0 %v150
  %193 = vmatpush.bf16.msra.mxu0 %v149
  %194 = vmatpush.bf16.msra.mxu0 %v148
  %195 = vmatpush.bf16.msra.mxu0 %v147
  %196 = vmatpush.bf16.msra.mxu0 %v146
  %197 = vmatmul.bf16.gmra.mxu0 %v67
  %v198 = vpop.f32.mrf.mxu0
  %v199 = vadd.f32 %v180, %v198
  %v200 = vpop.f32.mrf.mxu0
  %v201 = vadd.f32 %v182, %v200
  %202 = vmatmul.bf16.gmra.mxu0 %v69
  %v203 = vpop.f32.mrf.mxu0
  %v204 = vadd.f32 %v185, %v203
  %v205 = vpop.f32.mrf.mxu0
  %v206 = vadd.f32 %v187, %v205
  %207 = vdwg.mxu0
  %v208 = vmax.f32 %v199, 0.0
  %v209 = vmax.f32 %v201, 0.0
  %v210 = vmax.f32 %v204, 0.0
  %v211 = vmax.f32 %v206, 0.0
  %212 = vst [vmem:[%s3] sm:$0xff] %v208
  %213 = vst [vmem:[%s3 + $0x8] sm:$0xff] %v209
  %214 = vst [vmem:[%s3 + $0x10] sm:$0xff] %v210
  %215 = vst [vmem:[%s3 + $0x18] sm:$0xff] %v211
  // Predicated region
  $region14: #{encoder_bot_forward.6} parent=0 // pred_check
    _
  $region15: #{encoder_bot_forward.6} parent=0 // pred_check_branch
    %217 = sbr.rel (0) target = $region17
  $region16: #{encoder_bot_forward.6} parent=0 // pred_region
    _
  $region17: #{encoder_bot_forward.6} parent=0 // pred_fallthru
    _
  // Predicated region
  $region18: #{encoder_bot_forward.6} parent=0 // pred_check
    _
  $region19: #{encoder_bot_forward.6} parent=0 // pred_check_branch
    %219 = sbr.rel (0) target = $region21
  $region20: #{encoder_bot_forward.6} parent=0 // pred_region
    _
  $region21: #{encoder_bot_forward.6} parent=0 // pred_fallthru
    _

// kernel: encoder_bot_forward.7
$region0: #{encoder_bot_forward.7}
  #allocation0 [shape = 'u32[]', space=smem, size = 0x4, offset = 0x4, fixed_abs, tag = 'smem constant byte address 0x4 - core index']
  #allocation1 [shape = 'u32[72,128]{1,0:T(1,128)}', space=vmem, size = 0x9000, scoped, tag = 'internal scratch']
  %s0 = inlined_call_operand.vmem [shape: bf16[32,288], index: 0, kind: input, shape index: {}]
  %s1 = inlined_call_operand.vmem [shape: bf16[288,128], index: 1, kind: input, shape index: {}]
  %s2 = inlined_call_operand.vmem [shape: f32[1,128], index: 2, kind: input, shape index: {}]
  %s3 = inlined_call_operand.vmem [shape: f32[32,128], index: 3, kind: output, shape index: {}]
  %s4 = sld [smem:[#allocation0]]
  $region22: #{encoder_bot_forward.7} parent=0
    _
  %s6 = ssub.s32 1, %s4
  %s7 = scalar_select 0, %s6, %s4
  // Predicated region
  $region2: #{encoder_bot_forward.7} parent=0 // pred_check
    _
  $region3: #{encoder_bot_forward.7} parent=0 // pred_check_branch
    %9 = sbr.rel (0) target = $region5
  $region4: #{encoder_bot_forward.7} parent=0 // pred_region
    _
  $region5: #{encoder_bot_forward.7} parent=0 // pred_fallthru
    _
  // Predicated region
  $region6: #{encoder_bot_forward.7} parent=0 // pred_check
    _
  $region7: #{encoder_bot_forward.7} parent=0 // pred_check_branch
    %11 = sbr.rel (0) target = $region9
  $region8: #{encoder_bot_forward.7} parent=0 // pred_region
    _
  $region9: #{encoder_bot_forward.7} parent=0 // pred_fallthru
    _
  // Predicated region
  $region10: #{encoder_bot_forward.7} parent=0 // pred_check
    _
  $region11: #{encoder_bot_forward.7} parent=0 // pred_check_branch
    %13 = sbr.rel (0) target = $region13
  $region12: #{encoder_bot_forward.7} parent=0 // pred_region
    _
  $region13: #{encoder_bot_forward.7} parent=0 // pred_fallthru
    _
  %v15 = vld [vmem:[%s0] sm:$0xff]
  %v16 = vld [vmem:[%s0 + $0x8] sm:$0xf]
  %v17 = vld [vmem:[%s0 + $0xc] sm:$0xff]
  %v18 = vld [vmem:[%s0 + $0x14] sm:$0xf]
  %v19 = vld [vmem:[%s0 + $0x18] sm:$0xff]
  %v20 = vld [vmem:[%s0 + $0x20] sm:$0xf]
  %v21 = vld [vmem:[%s0 + $0x24] sm:$0xff]
  %v22 = vld [vmem:[%s0 + $0x2c] sm:$0xf]
  %v23 = vld [vmem:[%s1] sm:$0xf]
  %v24 = vld [vmem:[%s1 + $0x4] sm:$0xf]
  %v25 = vld [vmem:[%s1 + $0x8] sm:$0xf]
  %v26 = vld [vmem:[%s1 + $0xc] sm:$0xf]
  %v27 = vld [vmem:[%s1 + $0x10] sm:$0xf]
  %v28 = vld [vmem:[%s1 + $0x14] sm:$0xf]
  %v29 = vld [vmem:[%s1 + $0x18] sm:$0xf]
  %v30 = vld [vmem:[%s1 + $0x1c] sm:$0xf]
  %v31 = vld [vmem:[%s1 + $0x20] sm:$0xf]
  %v32 = vld [vmem:[%s1 + $0x24] sm:$0xf]
  %v33 = vld [vmem:[%s1 + $0x28] sm:$0xf]
  %v34 = vld [vmem:[%s1 + $0x2c] sm:$0xf]
  %v35 = vld [vmem:[%s1 + $0x30] sm:$0xf]
  %v36 = vld [vmem:[%s1 + $0x34] sm:$0xf]
  %v37 = vld [vmem:[%s1 + $0x38] sm:$0xf]
  %v38 = vld [vmem:[%s1 + $0x3c] sm:$0xf]
  %v39 = vld [vmem:[%s1 + $0x40] sm:$0xf]
  %v40 = vld [vmem:[%s1 + $0x44] sm:$0xf]
  %v41 = vld [vmem:[%s1 + $0x48] sm:$0xf]
  %v42 = vld [vmem:[%s1 + $0x4c] sm:$0xf]
  %v43 = vld [vmem:[%s1 + $0x50] sm:$0xf]
  %v44 = vld [vmem:[%s1 + $0x54] sm:$0xf]
  %v45 = vld [vmem:[%s1 + $0x58] sm:$0xf]
  %v46 = vld [vmem:[%s1 + $0x5c] sm:$0xf]
  %v47 = vld [vmem:[%s1 + $0x60] sm:$0xf]
  %v48 = vld [vmem:[%s1 + $0x64] sm:$0xf]
  %v49 = vld [vmem:[%s1 + $0x68] sm:$0xf]
  %v50 = vld [vmem:[%s1 + $0x6c] sm:$0xf]
  %v51 = vld [vmem:[%s1 + $0x70] sm:$0xf]
  %v52 = vld [vmem:[%s1 + $0x74] sm:$0xf]
  %v53 = vld [vmem:[%s1 + $0x78] sm:$0xf]
  %v54 = vld [vmem:[%s1 + $0x7c] sm:$0xf]
  %v55 = vld [vmem:[%s1 + $0x80] sm:$0xf]
  %v56 = vld [vmem:[%s1 + $0x84] sm:$0xf]
  %v57 = vld [vmem:[%s1 + $0x88] sm:$0xf]
  %v58 = vld [vmem:[%s1 + $0x8c] sm:$0xf]
  %v59 = vld [vmem:[%s2] sm:$0x1]
  %v61 = vperm.slane %v59, 0
  %v71 = vunpack.c.l.b16 %v15
  %v72 = vunpack.c.h.b16 %v15
  %v73 = vunpack.c.l.b16 %v16
  %v74 = vunpack.c.l.b16 %v17
  %v75 = vunpack.c.h.b16 %v17
  %v76 = vunpack.c.l.b16 %v18
  %v77 = vunpack.c.l.b16 %v19
  %v78 = vunpack.c.h.b16 %v19
  %v79 = vunpack.c.l.b16 %v20
  %v80 = vunpack.c.l.b16 %v21
  %v81 = vunpack.c.h.b16 %v21
  %v82 = vunpack.c.l.b16 %v22
  %v83 = vpack.c.b16 %v74, %v71
  %v84 = vpack.c.b16 %v75, %v72
  %v85 = vpack.c.b16 %v76, %v73
  %v86 = vpack.c.b16 %v80, %v77
  %v87 = vpack.c.b16 %v81, %v78
  %v88 = vpack.c.b16 %v82, %v79
  %v129 = vunpack.c.l.b16 %v23
  %v130 = vunpack.c.l.b16 %v24
  %v131 = vunpack.c.l.b16 %v25
  %v132 = vunpack.c.l.b16 %v26
  %v133 = vunpack.c.l.b16 %v27
  %v134 = vunpack.c.l.b16 %v28
  %v135 = vunpack.c.l.b16 %v29
  %v136 = vunpack.c.l.b16 %v30
  %v137 = vunpack.c.l.b16 %v31
  %v138 = vunpack.c.l.b16 %v32
  %v139 = vunpack.c.l.b16 %v33
  %v140 = vunpack.c.l.b16 %v34
  %v141 = vunpack.c.l.b16 %v35
  %v142 = vunpack.c.l.b16 %v36
  %v143 = vunpack.c.l.b16 %v37
  %v144 = vunpack.c.l.b16 %v38
  %v145 = vunpack.c.l.b16 %v39
  %v146 = vunpack.c.l.b16 %v40
  %v147 = vunpack.c.l.b16 %v41
  %v148 = vunpack.c.l.b16 %v42
  %v149 = vunpack.c.l.b16 %v43
  %v150 = vunpack.c.l.b16 %v44
  %v151 = vunpack.c.l.b16 %v45
  %v152 = vunpack.c.l.b16 %v46
  %v153 = vunpack.c.l.b16 %v47
  %v154 = vunpack.c.l.b16 %v48
  %v155 = vunpack.c.l.b16 %v49
  %v156 = vunpack.c.l.b16 %v50
  %v157 = vunpack.c.l.b16 %v51
  %v158 = vunpack.c.l.b16 %v52
  %v159 = vunpack.c.l.b16 %v53
  %v160 = vunpack.c.l.b16 %v54
  %v161 = vunpack.c.l.b16 %v55
  %v162 = vunpack.c.l.b16 %v56
  %v163 = vunpack.c.l.b16 %v57
  %v164 = vunpack.c.l.b16 %v58
  %v165 = vpack.c.b16 %v130, %v129
  %v166 = vpack.c.b16 %v132, %v131
  %v167 = vpack.c.b16 %v134, %v133
  %v168 = vpack.c.b16 %v136, %v135
  %v169 = vpack.c.b16 %v138, %v137
  %v170 = vpack.c.b16 %v140, %v139
  %v171 = vpack.c.b16 %v142, %v141
  %v172 = vpack.c.b16 %v144, %v143
  %v173 = vpack.c.b16 %v146, %v145
  %v174 = vpack.c.b16 %v148, %v147
  %v175 = vpack.c.b16 %v150, %v149
  %v176 = vpack.c.b16 %v152, %v151
  %v177 = vpack.c.b16 %v154, %v153
  %v178 = vpack.c.b16 %v156, %v155
  %v179 = vpack.c.b16 %v158, %v157
  %v180 = vpack.c.b16 %v160, %v159
  %v181 = vpack.c.b16 %v162, %v161
  %v182 = vpack.c.b16 %v164, %v163
  %vm201 = vcmask 261120
  %v203 = vsel %vm201, %v85, 0
  %v206 = vsel %vm201, %v88, 0
  %208 = vmatpush.bf16.msra.mxu0 %v172
  %209 = vmatpush.bf16.msra.mxu0 %v171
  %210 = vmatpush.bf16.msra.mxu0 %v170
  %211 = vmatpush.bf16.msra.mxu0 %v169
  %212 = vmatpush.bf16.msra.mxu0 %v168
  %213 = vmatpush.bf16.msra.mxu0 %v167
  %214 = vmatpush.bf16.msra.mxu0 %v166
  %215 = vmatpush.bf16.msra.mxu0 %v165
  %216 = vmatmul.bf16.gmra.mxu0 %v83
  %v217 = vpop.f32.mrf.mxu0
  %v218 = vadd.f32 %v61, %v217
  %v219 = vpop.f32.mrf.mxu0
  %v220 = vadd.f32 %v61, %v219
  %221 = vmatmul.bf16.gmra.mxu0 %v86
  %v222 = vpop.f32.mrf.mxu0
  %v223 = vadd.f32 %v61, %v222
  %v224 = vpop.f32.mrf.mxu0
  %v225 = vadd.f32 %v61, %v224
  %226 = vdwg.mxu0
  %227 = vmatpush.bf16.msra.mxu0 %v180
  %228 = vmatpush.bf16.msra.mxu0 %v179
  %229 = vmatpush.bf16.msra.mxu0 %v178
  %230 = vmatpush.bf16.msra.mxu0 %v177
  %231 = vmatpush.bf16.msra.mxu0 %v176
  %232 = vmatpush.bf16.msra.mxu0 %v175
  %233 = vmatpush.bf16.msra.mxu0 %v174
  %234 = vmatpush.bf16.msra.mxu0 %v173
  %235 = vmatmul.bf16.gmra.mxu0 %v84
  %v236 = vpop.f32.mrf.mxu0
  %v237 = vadd.f32 %v218, %v236
  %v238 = vpop.f32.mrf.mxu0
  %v239 = vadd.f32 %v220, %v238
  %240 = vmatmul.bf16.gmra.mxu0 %v87
  %v241 = vpop.f32.mrf.mxu0
  %v242 = vadd.f32 %v223, %v241
  %v243 = vpop.f32.mrf.mxu0
  %v244 = vadd.f32 %v225, %v243
  %245 = vdwg.mxu0
  %246 = vmatpush.bf16.msra.mxu0 0
  %247 = vmatpush.bf16.msra.mxu0 0
  %248 = vmatpush.bf16.msra.mxu0 0
  %249 = vmatpush.bf16.msra.mxu0 0
  %250 = vmatpush.bf16.msra.mxu0 0
  %251 = vmatpush.bf16.msra.mxu0 0
  %252 = vmatpush.bf16.msra.mxu0 %v182
  %253 = vmatpush.bf16.msra.mxu0 %v181
  %254 = vmatmul.bf16.gmra.mxu0 %v203
  %v255 = vpop.f32.mrf.mxu0
  %v256 = vadd.f32 %v237, %v255
  %v257 = vpop.f32.mrf.mxu0
  %v258 = vadd.f32 %v239, %v257
  %259 = vmatmul.bf16.gmra.mxu0 %v206
  %v260 = vpop.f32.mrf.mxu0
  %v261 = vadd.f32 %v242, %v260
  %v262 = vpop.f32.mrf.mxu0
  %v263 = vadd.f32 %v244, %v262
  %264 = vdwg.mxu0
  %265 = vst [vmem:[%s3] sm:$0xff] %v256
  %266 = vst [vmem:[%s3 + $0x8] sm:$0xff] %v258
  %267 = vst [vmem:[%s3 + $0x10] sm:$0xff] %v261
  %268 = vst [vmem:[%s3 + $0x18] sm:$0xff] %v263
  // Predicated region
  $region14: #{encoder_bot_forward.7} parent=0 // pred_check
    _
  $region15: #{encoder_bot_forward.7} parent=0 // pred_check_branch
    %270 = sbr.rel (0) target = $region17
  $region16: #{encoder_bot_forward.7} parent=0 // pred_region
    _
  $region17: #{encoder_bot_forward.7} parent=0 // pred_fallthru
    _
  // Predicated region
  $region18: #{encoder_bot_forward.7} parent=0 // pred_check
    _
  $region19: #{encoder_bot_forward.7} parent=0 // pred_check_branch
    %272 = sbr.rel (0) target = $region21
  $region20: #{encoder_bot_forward.7} parent=0 // pred_region
    _
  $region21: #{encoder_bot_forward.7} parent=0 // pred_fallthru
    _

// kernel: encoder_bot_forward.8
$region0: #{encoder_bot_forward.8}
  #allocation0 [shape = 'u32[]', space=smem, size = 0x4, offset = 0x4, fixed_abs, tag = 'smem constant byte address 0x4 - core index']
  #allocation1 [shape = 'u32[72,128]{1,0:T(1,128)}', space=vmem, size = 0x9000, scoped, tag = 'internal scratch']
  %s0 = inlined_call_operand.vmem [shape: bf16[32,1152], index: 0, kind: input, shape index: {}]
  %s1 = inlined_call_operand.vmem [shape: bf16[1152,16], index: 1, kind: input, shape index: {}]
  %s2 = inlined_call_operand.vmem [shape: bf16[16,128], index: 2, kind: input, shape index: {}]
  %s3 = inlined_call_operand.vmem [shape: f32[32,128], index: 3, kind: input, shape index: {}, may-alias: {3,4}]
  %s4 = inlined_call_operand.vmem [shape: f32[32,128], index: 4, kind: output, shape index: {}, may-alias: {3,4}]
  %s5 = sld [smem:[#allocation0]]
  $region26: #{encoder_bot_forward.8} parent=0
    _
  %s7 = ssub.s32 1, %s5
  %s8 = scalar_select 0, %s7, %s5
  // Predicated region
  $region2: #{encoder_bot_forward.8} parent=0 // pred_check
    _
  $region3: #{encoder_bot_forward.8} parent=0 // pred_check_branch
    %10 = sbr.rel (0) target = $region5
  $region4: #{encoder_bot_forward.8} parent=0 // pred_region
    _
  $region5: #{encoder_bot_forward.8} parent=0 // pred_fallthru
    _
  // Predicated region
  $region6: #{encoder_bot_forward.8} parent=0 // pred_check
    _
  $region7: #{encoder_bot_forward.8} parent=0 // pred_check_branch
    %12 = sbr.rel (0) target = $region9
  $region8: #{encoder_bot_forward.8} parent=0 // pred_region
    _
  $region9: #{encoder_bot_forward.8} parent=0 // pred_fallthru
    _
  // Predicated region
  $region10: #{encoder_bot_forward.8} parent=0 // pred_check
    _
  $region11: #{encoder_bot_forward.8} parent=0 // pred_check_branch
    %14 = sbr.rel (0) target = $region13
  $region12: #{encoder_bot_forward.8} parent=0 // pred_region
    _
  $region13: #{encoder_bot_forward.8} parent=0 // pred_fallthru
    _
  // Predicated region
  $region14: #{encoder_bot_forward.8} parent=0 // pred_check
    _
  $region15: #{encoder_bot_forward.8} parent=0 // pred_check_branch
    %16 = sbr.rel (0) target = $region17
  $region16: #{encoder_bot_forward.8} parent=0 // pred_region
    _
  $region17: #{encoder_bot_forward.8} parent=0 // pred_fallthru
    _
  %v18 = vld [vmem:[%s0] sm:$0xff]
  %v19 = vld [vmem:[%s0 + $0x8] sm:$0xff]
  %v20 = vld [vmem:[%s0 + $0x10] sm:$0xff]
  %v21 = vld [vmem:[%s0 + $0x18] sm:$0xff]
  %v22 = vld [vmem:[%s0 + $0x20] sm:$0xf]
  %v23 = vld [vmem:[%s0 + $0x24] sm:$0xff]
  %v24 = vld [vmem:[%s0 + $0x2c] sm:$0xff]
  %v25 = vld [vmem:[%s0 + $0x34] sm:$0xff]
  %v26 = vld [vmem:[%s0 + $0x3c] sm:$0xff]
  %v27 = vld [vmem:[%s0 + $0x44] sm:$0xf]
  %v28 = vld [vmem:[%s0 + $0x48] sm:$0xff]
  %v29 = vld [vmem:[%s0 + $0x50] sm:$0xff]
  %v30 = vld [vmem:[%s0 + $0x58] sm:$0xff]
  %v31 = vld [vmem:[%s0 + $0x60] sm:$0xff]
  %v32 = vld [vmem:[%s0 + $0x68] sm:$0xf]
  %v33 = vld [vmem:[%s0 + $0x6c] sm:$0xff]
  %v34 = vld [vmem:[%s0 + $0x74] sm:$0xff]
  %v35 = vld [vmem:[%s0 + $0x7c] sm:$0xff]
  %v36 = vld [vmem:[%s0 + $0x84] sm:$0xff]
  %v37 = vld [vmem:[%s0 + $0x8c] sm:$0xf]
  %v38 = vld [vmem:[%s1] sm:$0xf]
  %v39 = vld [vmem:[%s1 + $0x4] sm:$0xf]
  %v40 = vld [vmem:[%s1 + $0x8] sm:$0xf]
  %v41 = vld [vmem:[%s1 + $0xc] sm:$0xf]
  %v42 = vld [vmem:[%s1 + $0x10] sm:$0xf]
  %v43 = vld [vmem:[%s1 + $0x14] sm:$0xf]
  %v44 = vld [vmem:[%s1 + $0x18] sm:$0xf]
  %v45 = vld [vmem:[%s1 + $0x1c] sm:$0xf]
  %v46 = vld [vmem:[%s1 + $0x20] sm:$0xf]
  %v47 = vld [vmem:[%s1 + $0x24] sm:$0xf]
  %v48 = vld [vmem:[%s1 + $0x28] sm:$0xf]
  %v49 = vld [vmem:[%s1 + $0x2c] sm:$0xf]
  %v50 = vld [vmem:[%s1 + $0x30] sm:$0xf]
  %v51 = vld [vmem:[%s1 + $0x34] sm:$0xf]
  %v52 = vld [vmem:[%s1 + $0x38] sm:$0xf]
  %v53 = vld [vmem:[%s1 + $0x3c] sm:$0xf]
  %v54 = vld [vmem:[%s1 + $0x40] sm:$0xf]
  %v55 = vld [vmem:[%s1 + $0x44] sm:$0xf]
  %v56 = vld [vmem:[%s1 + $0x48] sm:$0xf]
  %v57 = vld [vmem:[%s1 + $0x4c] sm:$0xf]
  %v58 = vld [vmem:[%s1 + $0x50] sm:$0xf]
  %v59 = vld [vmem:[%s1 + $0x54] sm:$0xf]
  %v60 = vld [vmem:[%s1 + $0x58] sm:$0xf]
  %v61 = vld [vmem:[%s1 + $0x5c] sm:$0xf]
  %v62 = vld [vmem:[%s1 + $0x60] sm:$0xf]
  %v63 = vld [vmem:[%s1 + $0x64] sm:$0xf]
  %v64 = vld [vmem:[%s1 + $0x68] sm:$0xf]
  %v65 = vld [vmem:[%s1 + $0x6c] sm:$0xf]
  %v66 = vld [vmem:[%s1 + $0x70] sm:$0xf]
  %v67 = vld [vmem:[%s1 + $0x74] sm:$0xf]
  %v68 = vld [vmem:[%s1 + $0x78] sm:$0xf]
  %v69 = vld [vmem:[%s1 + $0x7c] sm:$0xf]
  %v70 = vld [vmem:[%s1 + $0x80] sm:$0xf]
  %v71 = vld [vmem:[%s1 + $0x84] sm:$0xf]
  %v72 = vld [vmem:[%s1 + $0x88] sm:$0xf]
  %v73 = vld [vmem:[%s1 + $0x8c] sm:$0xf]
  %v74 = vld [vmem:[%s1 + $0x90] sm:$0xf]
  %v75 = vld [vmem:[%s1 + $0x94] sm:$0xf]
  %v76 = vld [vmem:[%s1 + $0x98] sm:$0xf]
  %v77 = vld [vmem:[%s1 + $0x9c] sm:$0xf]
  %v78 = vld [vmem:[%s1 + $0xa0] sm:$0xf]
  %v79 = vld [vmem:[%s1 + $0xa4] sm:$0xf]
  %v80 = vld [vmem:[%s1 + $0xa8] sm:$0xf]
  %v81 = vld [vmem:[%s1 + $0xac] sm:$0xf]
  %v82 = vld [vmem:[%s1 + $0xb0] sm:$0xf]
  %v83 = vld [vmem:[%s1 + $0xb4] sm:$0xf]
  %v84 = vld [vmem:[%s1 + $0xb8] sm:$0xf]
  %v85 = vld [vmem:[%s1 + $0xbc] sm:$0xf]
  %v86 = vld [vmem:[%s1 + $0xc0] sm:$0xf]
  %v87 = vld [vmem:[%s1 + $0xc4] sm:$0xf]
  %v88 = vld [vmem:[%s1 + $0xc8] sm:$0xf]
  %v89 = vld [vmem:[%s1 + $0xcc] sm:$0xf]
  %v90 = vld [vmem:[%s1 + $0xd0] sm:$0xf]
  %v91 = vld [vmem:[%s1 + $0xd4] sm:$0xf]
  %v92 = vld [vmem:[%s1 + $0xd8] sm:$0xf]
  %v93 = vld [vmem:[%s1 + $0xdc] sm:$0xf]
  %v94 = vld [vmem:[%s1 + $0xe0] sm:$0xf]
  %v95 = vld [vmem:[%s1 + $0xe4] sm:$0xf]
  %v96 = vld [vmem:[%s1 + $0xe8] sm:$0xf]
  %v97 = vld [vmem:[%s1 + $0xec] sm:$0xf]
  %v98 = vld [vmem:[%s1 + $0xf0] sm:$0xf]
  %v99 = vld [vmem:[%s1 + $0xf4] sm:$0xf]
  %v100 = vld [vmem:[%s1 + $0xf8] sm:$0xf]
  %v101 = vld [vmem:[%s1 + $0xfc] sm:$0xf]
  %v102 = vld [vmem:[%s1 + $0x100] sm:$0xf]
  %v103 = vld [vmem:[%s1 + $0x104] sm:$0xf]
  %v104 = vld [vmem:[%s1 + $0x108] sm:$0xf]
  %v105 = vld [vmem:[%s1 + $0x10c] sm:$0xf]
  %v106 = vld [vmem:[%s1 + $0x110] sm:$0xf]
  %v107 = vld [vmem:[%s1 + $0x114] sm:$0xf]
  %v108 = vld [vmem:[%s1 + $0x118] sm:$0xf]
  %v109 = vld [vmem:[%s1 + $0x11c] sm:$0xf]
  %v110 = vld [vmem:[%s1 + $0x120] sm:$0xf]
  %v111 = vld [vmem:[%s1 + $0x124] sm:$0xf]
  %v112 = vld [vmem:[%s1 + $0x128] sm:$0xf]
  %v113 = vld [vmem:[%s1 + $0x12c] sm:$0xf]
  %v114 = vld [vmem:[%s1 + $0x130] sm:$0xf]
  %v115 = vld [vmem:[%s1 + $0x134] sm:$0xf]
  %v116 = vld [vmem:[%s1 + $0x138] sm:$0xf]
  %v117 = vld [vmem:[%s1 + $0x13c] sm:$0xf]
  %v118 = vld [vmem:[%s1 + $0x140] sm:$0xf]
  %v119 = vld [vmem:[%s1 + $0x144] sm:$0xf]
  %v120 = vld [vmem:[%s1 + $0x148] sm:$0xf]
  %v121 = vld [vmem:[%s1 + $0x14c] sm:$0xf]
  %v122 = vld [vmem:[%s1 + $0x150] sm:$0xf]
  %v123 = vld [vmem:[%s1 + $0x154] sm:$0xf]
  %v124 = vld [vmem:[%s1 + $0x158] sm:$0xf]
  %v125 = vld [vmem:[%s1 + $0x15c] sm:$0xf]
  %v126 = vld [vmem:[%s1 + $0x160] sm:$0xf]
  %v127 = vld [vmem:[%s1 + $0x164] sm:$0xf]
  %v128 = vld [vmem:[%s1 + $0x168] sm:$0xf]
  %v129 = vld [vmem:[%s1 + $0x16c] sm:$0xf]
  %v130 = vld [vmem:[%s1 + $0x170] sm:$0xf]
  %v131 = vld [vmem:[%s1 + $0x174] sm:$0xf]
  %v132 = vld [vmem:[%s1 + $0x178] sm:$0xf]
  %v133 = vld [vmem:[%s1 + $0x17c] sm:$0xf]
  %v134 = vld [vmem:[%s1 + $0x180] sm:$0xf]
  %v135 = vld [vmem:[%s1 + $0x184] sm:$0xf]
  %v136 = vld [vmem:[%s1 + $0x188] sm:$0xf]
  %v137 = vld [vmem:[%s1 + $0x18c] sm:$0xf]
  %v138 = vld [vmem:[%s1 + $0x190] sm:$0xf]
  %v139 = vld [vmem:[%s1 + $0x194] sm:$0xf]
  %v140 = vld [vmem:[%s1 + $0x198] sm:$0xf]
  %v141 = vld [vmem:[%s1 + $0x19c] sm:$0xf]
  %v142 = vld [vmem:[%s1 + $0x1a0] sm:$0xf]
  %v143 = vld [vmem:[%s1 + $0x1a4] sm:$0xf]
  %v144 = vld [vmem:[%s1 + $0x1a8] sm:$0xf]
  %v145 = vld [vmem:[%s1 + $0x1ac] sm:$0xf]
  %v146 = vld [vmem:[%s1 + $0x1b0] sm:$0xf]
  %v147 = vld [vmem:[%s1 + $0x1b4] sm:$0xf]
  %v148 = vld [vmem:[%s1 + $0x1b8] sm:$0xf]
  %v149 = vld [vmem:[%s1 + $0x1bc] sm:$0xf]
  %v150 = vld [vmem:[%s1 + $0x1c0] sm:$0xf]
  %v151 = vld [vmem:[%s1 + $0x1c4] sm:$0xf]
  %v152 = vld [vmem:[%s1 + $0x1c8] sm:$0xf]
  %v153 = vld [vmem:[%s1 + $0x1cc] sm:$0xf]
  %v154 = vld [vmem:[%s1 + $0x1d0] sm:$0xf]
  %v155 = vld [vmem:[%s1 + $0x1d4] sm:$0xf]
  %v156 = vld [vmem:[%s1 + $0x1d8] sm:$0xf]
  %v157 = vld [vmem:[%s1 + $0x1dc] sm:$0xf]
  %v158 = vld [vmem:[%s1 + $0x1e0] sm:$0xf]
  %v159 = vld [vmem:[%s1 + $0x1e4] sm:$0xf]
  %v160 = vld [vmem:[%s1 + $0x1e8] sm:$0xf]
  %v161 = vld [vmem:[%s1 + $0x1ec] sm:$0xf]
  %v162 = vld [vmem:[%s1 + $0x1f0] sm:$0xf]
  %v163 = vld [vmem:[%s1 + $0x1f4] sm:$0xf]
  %v164 = vld [vmem:[%s1 + $0x1f8] sm:$0xf]
  %v165 = vld [vmem:[%s1 + $0x1fc] sm:$0xf]
  %v166 = vld [vmem:[%s1 + $0x200] sm:$0xf]
  %v167 = vld [vmem:[%s1 + $0x204] sm:$0xf]
  %v168 = vld [vmem:[%s1 + $0x208] sm:$0xf]
  %v169 = vld [vmem:[%s1 + $0x20c] sm:$0xf]
  %v170 = vld [vmem:[%s1 + $0x210] sm:$0xf]
  %v171 = vld [vmem:[%s1 + $0x214] sm:$0xf]
  %v172 = vld [vmem:[%s1 + $0x218] sm:$0xf]
  %v173 = vld [vmem:[%s1 + $0x21c] sm:$0xf]
  %v174 = vld [vmem:[%s1 + $0x220] sm:$0xf]
  %v175 = vld [vmem:[%s1 + $0x224] sm:$0xf]
  %v176 = vld [vmem:[%s1 + $0x228] sm:$0xf]
  %v177 = vld [vmem:[%s1 + $0x22c] sm:$0xf]
  %v178 = vld [vmem:[%s1 + $0x230] sm:$0xf]
  %v179 = vld [vmem:[%s1 + $0x234] sm:$0xf]
  %v180 = vld [vmem:[%s1 + $0x238] sm:$0xf]
  %v181 = vld [vmem:[%s1 + $0x23c] sm:$0xf]
  %v202 = vunpack.c.l.b16 %v18
  %v203 = vunpack.c.h.b16 %v18
  %v204 = vunpack.c.l.b16 %v19
  %v205 = vunpack.c.h.b16 %v19
  %v206 = vunpack.c.l.b16 %v20
  %v207 = vunpack.c.h.b16 %v20
  %v208 = vunpack.c.l.b16 %v21
  %v209 = vunpack.c.h.b16 %v21
  %v210 = vunpack.c.l.b16 %v22
  %v211 = vunpack.c.l.b16 %v23
  %v212 = vunpack.c.h.b16 %v23
  %v213 = vunpack.c.l.b16 %v24
  %v214 = vunpack.c.h.b16 %v24
  %v215 = vunpack.c.l.b16 %v25
  %v216 = vunpack.c.h.b16 %v25
  %v217 = vunpack.c.l.b16 %v26
  %v218 = vunpack.c.h.b16 %v26
  %v219 = vunpack.c.l.b16 %v27
  %v220 = vunpack.c.l.b16 %v28
  %v221 = vunpack.c.h.b16 %v28
  %v222 = vunpack.c.l.b16 %v29
  %v223 = vunpack.c.h.b16 %v29
  %v224 = vunpack.c.l.b16 %v30
  %v225 = vunpack.c.h.b16 %v30
  %v226 = vunpack.c.l.b16 %v31
  %v227 = vunpack.c.h.b16 %v31
  %v228 = vunpack.c.l.b16 %v32
  %v229 = vunpack.c.l.b16 %v33
  %v230 = vunpack.c.h.b16 %v33
  %v231 = vunpack.c.l.b16 %v34
  %v232 = vunpack.c.h.b16 %v34
  %v233 = vunpack.c.l.b16 %v35
  %v234 = vunpack.c.h.b16 %v35
  %v235 = vunpack.c.l.b16 %v36
  %v236 = vunpack.c.h.b16 %v36
  %v237 = vunpack.c.l.b16 %v37
  %v238 = vpack.c.b16 %v211, %v202
  %v239 = vpack.c.b16 %v212, %v203
  %v240 = vpack.c.b16 %v213, %v204
  %v241 = vpack.c.b16 %v214, %v205
  %v242 = vpack.c.b16 %v215, %v206
  %v243 = vpack.c.b16 %v216, %v207
  %v244 = vpack.c.b16 %v217, %v208
  %v245 = vpack.c.b16 %v218, %v209
  %v246 = vpack.c.b16 %v219, %v210
  %v247 = vpack.c.b16 %v229, %v220
  %v248 = vpack.c.b16 %v230, %v221
  %v249 = vpack.c.b16 %v231, %v222
  %v250 = vpack.c.b16 %v232, %v223
  %v251 = vpack.c.b16 %v233, %v224
  %v252 = vpack.c.b16 %v234, %v225
  %v253 = vpack.c.b16 %v235, %v226
  %v254 = vpack.c.b16 %v236, %v227
  %v255 = vpack.c.b16 %v237, %v228
  %v418 = vunpack.c.l.b16 %v38
  %v419 = vunpack.c.l.b16 %v39
  %v420 = vunpack.c.l.b16 %v40
  %v421 = vunpack.c.l.b16 %v41
  %v422 = vunpack.c.l.b16 %v42
  %v423 = vunpack.c.l.b16 %v43
  %v424 = vunpack.c.l.b16 %v44
  %v425 = vunpack.c.l.b16 %v45
  %v426 = vunpack.c.l.b16 %v46
  %v427 = vunpack.c.l.b16 %v47
  %v428 = vunpack.c.l.b16 %v48
  %v429 = vunpack.c.l.b16 %v49
  %v430 = vunpack.c.l.b16 %v50
  %v431 = vunpack.c.l.b16 %v51
  %v432 = vunpack.c.l.b16 %v52
  %v433 = vunpack.c.l.b16 %v53
  %v434 = vunpack.c.l.b16 %v54
  %v435 = vunpack.c.l.b16 %v55
  %v436 = vunpack.c.l.b16 %v56
  %v437 = vunpack.c.l.b16 %v57
  %v438 = vunpack.c.l.b16 %v58
  %v439 = vunpack.c.l.b16 %v59
  %v440 = vunpack.c.l.b16 %v60
  %v441 = vunpack.c.l.b16 %v61
  %v442 = vunpack.c.l.b16 %v62
  %v443 = vunpack.c.l.b16 %v63
  %v444 = vunpack.c.l.b16 %v64
  %v445 = vunpack.c.l.b16 %v65
  %v446 = vunpack.c.l.b16 %v66
  %v447 = vunpack.c.l.b16 %v67
  %v448 = vunpack.c.l.b16 %v68
  %v449 = vunpack.c.l.b16 %v69
  %v450 = vunpack.c.l.b16 %v70
  %v451 = vunpack.c.l.b16 %v71
  %v452 = vunpack.c.l.b16 %v72
  %v453 = vunpack.c.l.b16 %v73
  %v454 = vunpack.c.l.b16 %v74
  %v455 = vunpack.c.l.b16 %v75
  %v456 = vunpack.c.l.b16 %v76
  %v457 = vunpack.c.l.b16 %v77
  %v458 = vunpack.c.l.b16 %v78
  %v459 = vunpack.c.l.b16 %v79
  %v460 = vunpack.c.l.b16 %v80
  %v461 = vunpack.c.l.b16 %v81
  %v462 = vunpack.c.l.b16 %v82
  %v463 = vunpack.c.l.b16 %v83
  %v464 = vunpack.c.l.b16 %v84
  %v465 = vunpack.c.l.b16 %v85
  %v466 = vunpack.c.l.b16 %v86
  %v467 = vunpack.c.l.b16 %v87
  %v468 = vunpack.c.l.b16 %v88
  %v469 = vunpack.c.l.b16 %v89
  %v470 = vunpack.c.l.b16 %v90
  %v471 = vunpack.c.l.b16 %v91
  %v472 = vunpack.c.l.b16 %v92
  %v473 = vunpack.c.l.b16 %v93
  %v474 = vunpack.c.l.b16 %v94
  %v475 = vunpack.c.l.b16 %v95
  %v476 = vunpack.c.l.b16 %v96
  %v477 = vunpack.c.l.b16 %v97
  %v478 = vunpack.c.l.b16 %v98
  %v479 = vunpack.c.l.b16 %v99
  %v480 = vunpack.c.l.b16 %v100
  %v481 = vunpack.c.l.b16 %v101
  %v482 = vunpack.c.l.b16 %v102
  %v483 = vunpack.c.l.b16 %v103
  %v484 = vunpack.c.l.b16 %v104
  %v485 = vunpack.c.l.b16 %v105
  %v486 = vunpack.c.l.b16 %v106
  %v487 = vunpack.c.l.b16 %v107
  %v488 = vunpack.c.l.b16 %v108
  %v489 = vunpack.c.l.b16 %v109
  %v490 = vunpack.c.l.b16 %v110
  %v491 = vunpack.c.l.b16 %v111
  %v492 = vunpack.c.l.b16 %v112
  %v493 = vunpack.c.l.b16 %v113
  %v494 = vunpack.c.l.b16 %v114
  %v495 = vunpack.c.l.b16 %v115
  %v496 = vunpack.c.l.b16 %v116
  %v497 = vunpack.c.l.b16 %v117
  %v498 = vunpack.c.l.b16 %v118
  %v499 = vunpack.c.l.b16 %v119
  %v500 = vunpack.c.l.b16 %v120
  %v501 = vunpack.c.l.b16 %v121
  %v502 = vunpack.c.l.b16 %v122
  %v503 = vunpack.c.l.b16 %v123
  %v504 = vunpack.c.l.b16 %v124
  %v505 = vunpack.c.l.b16 %v125
  %v506 = vunpack.c.l.b16 %v126
  %v507 = vunpack.c.l.b16 %v127
  %v508 = vunpack.c.l.b16 %v128
  %v509 = vunpack.c.l.b16 %v129
  %v510 = vunpack.c.l.b16 %v130
  %v511 = vunpack.c.l.b16 %v131
  %v512 = vunpack.c.l.b16 %v132
  %v513 = vunpack.c.l.b16 %v133
  %v514 = vunpack.c.l.b16 %v134
  %v515 = vunpack.c.l.b16 %v135
  %v516 = vunpack.c.l.b16 %v136
  %v517 = vunpack.c.l.b16 %v137
  %v518 = vunpack.c.l.b16 %v138
  %v519 = vunpack.c.l.b16 %v139
  %v520 = vunpack.c.l.b16 %v140
  %v521 = vunpack.c.l.b16 %v141
  %v522 = vunpack.c.l.b16 %v142
  %v523 = vunpack.c.l.b16 %v143
  %v524 = vunpack.c.l.b16 %v144
  %v525 = vunpack.c.l.b16 %v145
  %v526 = vunpack.c.l.b16 %v146
  %v527 = vunpack.c.l.b16 %v147
  %v528 = vunpack.c.l.b16 %v148
  %v529 = vunpack.c.l.b16 %v149
  %v530 = vunpack.c.l.b16 %v150
  %v531 = vunpack.c.l.b16 %v151
  %v532 = vunpack.c.l.b16 %v152
  %v533 = vunpack.c.l.b16 %v153
  %v534 = vunpack.c.l.b16 %v154
  %v535 = vunpack.c.l.b16 %v155
  %v536 = vunpack.c.l.b16 %v156
  %v537 = vunpack.c.l.b16 %v157
  %v538 = vunpack.c.l.b16 %v158
  %v539 = vunpack.c.l.b16 %v159
  %v540 = vunpack.c.l.b16 %v160
  %v541 = vunpack.c.l.b16 %v161
  %v542 = vunpack.c.l.b16 %v162
  %v543 = vunpack.c.l.b16 %v163
  %v544 = vunpack.c.l.b16 %v164
  %v545 = vunpack.c.l.b16 %v165
  %v546 = vunpack.c.l.b16 %v166
  %v547 = vunpack.c.l.b16 %v167
  %v548 = vunpack.c.l.b16 %v168
  %v549 = vunpack.c.l.b16 %v169
  %v550 = vunpack.c.l.b16 %v170
  %v551 = vunpack.c.l.b16 %v171
  %v552 = vunpack.c.l.b16 %v172
  %v553 = vunpack.c.l.b16 %v173
  %v554 = vunpack.c.l.b16 %v174
  %v555 = vunpack.c.l.b16 %v175
  %v556 = vunpack.c.l.b16 %v176
  %v557 = vunpack.c.l.b16 %v177
  %v558 = vunpack.c.l.b16 %v178
  %v559 = vunpack.c.l.b16 %v179
  %v560 = vunpack.c.l.b16 %v180
  %v561 = vunpack.c.l.b16 %v181
  %v562 = vpack.c.b16 %v419, %v418
  %v563 = vpack.c.b16 %v421, %v420
  %v564 = vpack.c.b16 %v423, %v422
  %v565 = vpack.c.b16 %v425, %v424
  %v566 = vpack.c.b16 %v427, %v426
  %v567 = vpack.c.b16 %v429, %v428
  %v568 = vpack.c.b16 %v431, %v430
  %v569 = vpack.c.b16 %v433, %v432
  %v570 = vpack.c.b16 %v435, %v434
  %v571 = vpack.c.b16 %v437, %v436
  %v572 = vpack.c.b16 %v439, %v438
  %v573 = vpack.c.b16 %v441, %v440
  %v574 = vpack.c.b16 %v443, %v442
  %v575 = vpack.c.b16 %v445, %v444
  %v576 = vpack.c.b16 %v447, %v446
  %v577 = vpack.c.b16 %v449, %v448
  %v578 = vpack.c.b16 %v451, %v450
  %v579 = vpack.c.b16 %v453, %v452
  %v580 = vpack.c.b16 %v455, %v454
  %v581 = vpack.c.b16 %v457, %v456
  %v582 = vpack.c.b16 %v459, %v458
  %v583 = vpack.c.b16 %v461, %v460
  %v584 = vpack.c.b16 %v463, %v462
  %v585 = vpack.c.b16 %v465, %v464
  %v586 = vpack.c.b16 %v467, %v466
  %v587 = vpack.c.b16 %v469, %v468
  %v588 = vpack.c.b16 %v471, %v470
  %v589 = vpack.c.b16 %v473, %v472
  %v590 = vpack.c.b16 %v475, %v474
  %v591 = vpack.c.b16 %v477, %v476
  %v592 = vpack.c.b16 %v479, %v478
  %v593 = vpack.c.b16 %v481, %v480
  %v594 = vpack.c.b16 %v483, %v482
  %v595 = vpack.c.b16 %v485, %v484
  %v596 = vpack.c.b16 %v487, %v486
  %v597 = vpack.c.b16 %v489, %v488
  %v598 = vpack.c.b16 %v491, %v490
  %v599 = vpack.c.b16 %v493, %v492
  %v600 = vpack.c.b16 %v495, %v494
  %v601 = vpack.c.b16 %v497, %v496
  %v602 = vpack.c.b16 %v499, %v498
  %v603 = vpack.c.b16 %v501, %v500
  %v604 = vpack.c.b16 %v503, %v502
  %v605 = vpack.c.b16 %v505, %v504
  %v606 = vpack.c.b16 %v507, %v506
  %v607 = vpack.c.b16 %v509, %v508
  %v608 = vpack.c.b16 %v511, %v510
  %v609 = vpack.c.b16 %v513, %v512
  %v610 = vpack.c.b16 %v515, %v514
  %v611 = vpack.c.b16 %v517, %v516
  %v612 = vpack.c.b16 %v519, %v518
  %v613 = vpack.c.b16 %v521, %v520
  %v614 = vpack.c.b16 %v523, %v522
  %v615 = vpack.c.b16 %v525, %v524
  %v616 = vpack.c.b16 %v527, %v526
  %v617 = vpack.c.b16 %v529, %v528
  %v618 = vpack.c.b16 %v531, %v530
  %v619 = vpack.c.b16 %v533, %v532
  %v620 = vpack.c.b16 %v535, %v534
  %v621 = vpack.c.b16 %v537, %v536
  %v622 = vpack.c.b16 %v539, %v538
  %v623 = vpack.c.b16 %v541, %v540
  %v624 = vpack.c.b16 %v543, %v542
  %v625 = vpack.c.b16 %v545, %v544
  %v626 = vpack.c.b16 %v547, %v546
  %v627 = vpack.c.b16 %v549, %v548
  %v628 = vpack.c.b16 %v551, %v550
  %v629 = vpack.c.b16 %v553, %v552
  %v630 = vpack.c.b16 %v555, %v554
  %v631 = vpack.c.b16 %v557, %v556
  %v632 = vpack.c.b16 %v559, %v558
  %v633 = vpack.c.b16 %v561, %v560
  %706 = vmatpush.bf16.msra.mxu0 %v569
  %707 = vmatpush.bf16.msra.mxu0 %v568
  %708 = vmatpush.bf16.msra.mxu0 %v567
  %709 = vmatpush.bf16.msra.mxu0 %v566
  %710 = vmatpush.bf16.msra.mxu0 %v565
  %711 = vmatpush.bf16.msra.mxu0 %v564
  %712 = vmatpush.bf16.msra.mxu0 %v563
  %713 = vmatpush.bf16.msra.mxu0 %v562
  %714 = vmatmul.bf16.gmra.mxu0 %v238
  %v715 = vpop.f32.mrf.mxu0
  %v716 = vadd.f32 0.0, %v715
  %v717 = vpop.f32.mrf.mxu0
  %v718 = vadd.f32 0.0, %v717
  %719 = vmatmul.bf16.gmra.mxu0 %v247
  %v720 = vpop.f32.mrf.mxu0
  %v721 = vadd.f32 0.0, %v720
  %v722 = vpop.f32.mrf.mxu0
  %v723 = vadd.f32 0.0, %v722
  %724 = vdwg.mxu0
  %725 = vmatpush.bf16.msra.mxu0 %v577
  %726 = vmatpush.bf16.msra.mxu0 %v576
  %727 = vmatpush.bf16.msra.mxu0 %v575
  %728 = vmatpush.bf16.msra.mxu0 %v574
  %729 = vmatpush.bf16.msra.mxu0 %v573
  %730 = vmatpush.bf16.msra.mxu0 %v572
  %731 = vmatpush.bf16.msra.mxu0 %v571
  %732 = vmatpush.bf16.msra.mxu0 %v570
  %733 = vmatmul.bf16.gmra.mxu0 %v239
  %v734 = vpop.f32.mrf.mxu0
  %v735 = vadd.f32 %v716, %v734
  %v736 = vpop.f32.mrf.mxu0
  %v737 = vadd.f32 %v718, %v736
  %738 = vmatmul.bf16.gmra.mxu0 %v248
  %v739 = vpop.f32.mrf.mxu0
  %v740 = vadd.f32 %v721, %v739
  %v741 = vpop.f32.mrf.mxu0
  %v742 = vadd.f32 %v723, %v741
  %743 = vdwg.mxu0
  %744 = vmatpush.bf16.msra.mxu0 %v585
  %745 = vmatpush.bf16.msra.mxu0 %v584
  %746 = vmatpush.bf16.msra.mxu0 %v583
  %747 = vmatpush.bf16.msra.mxu0 %v582
  %748 = vmatpush.bf16.msra.mxu0 %v581
  %749 = vmatpush.bf16.msra.mxu0 %v580
  %750 = vmatpush.bf16.msra.mxu0 %v579
  %751 = vmatpush.bf16.msra.mxu0 %v578
  %752 = vmatmul.bf16.gmra.mxu0 %v240
  %v753 = vpop.f32.mrf.mxu0
  %v754 = vadd.f32 %v735, %v753
  %v755 = vpop.f32.mrf.mxu0
  %v756 = vadd.f32 %v737, %v755
  %757 = vmatmul.bf16.gmra.mxu0 %v249
  %v758 = vpop.f32.mrf.mxu0
  %v759 = vadd.f32 %v740, %v758
  %v760 = vpop.f32.mrf.mxu0
  %v761 = vadd.f32 %v742, %v760
  %762 = vdwg.mxu0
  %763 = vmatpush.bf16.msra.mxu0 %v593
  %764 = vmatpush.bf16.msra.mxu0 %v592
  %765 = vmatpush.bf16.msra.mxu0 %v591
  %766 = vmatpush.bf16.msra.mxu0 %v590
  %767 = vmatpush.bf16.msra.mxu0 %v589
  %768 = vmatpush.bf16.msra.mxu0 %v588
  %769 = vmatpush.bf16.msra.mxu0 %v587
  %770 = vmatpush.bf16.msra.mxu0 %v586
  %771 = vmatmul.bf16.gmra.mxu0 %v241
  %v772 = vpop.f32.mrf.mxu0
  %v773 = vadd.f32 %v754, %v772
  %v774 = vpop.f32.mrf.mxu0
  %v775 = vadd.f32 %v756, %v774
  %776 = vmatmul.bf16.gmra.mxu0 %v250
  %v777 = vpop.f32.mrf.mxu0
  %v778 = vadd.f32 %v759, %v777
  %v779 = vpop.f32.mrf.mxu0
  %v780 = vadd.f32 %v761, %v779
  %781 = vdwg.mxu0
  %782 = vmatpush.bf16.msra.mxu0 %v601
  %783 = vmatpush.bf16.msra.mxu0 %v600
  %784 = vmatpush.bf16.msra.mxu0 %v599
  %785 = vmatpush.bf16.msra.mxu0 %v598
  %786 = vmatpush.bf16.msra.mxu0 %v597
  %787 = vmatpush.bf16.msra.mxu0 %v596
  %788 = vmatpush.bf16.msra.mxu0 %v595
  %789 = vmatpush.bf16.msra.mxu0 %v594
  %790 = vmatmul.bf16.gmra.mxu0 %v242
  %v791 = vpop.f32.mrf.mxu0
  %v792 = vadd.f32 %v773, %v791
  %v793 = vpop.f32.mrf.mxu0
  %v794 = vadd.f32 %v775, %v793
  %795 = vmatmul.bf16.gmra.mxu0 %v251
  %v796 = vpop.f32.mrf.mxu0
  %v797 = vadd.f32 %v778, %v796
  %v798 = vpop.f32.mrf.mxu0
  %v799 = vadd.f32 %v780, %v798
  %800 = vdwg.mxu0
  %801 = vmatpush.bf16.msra.mxu0 %v609
  %802 = vmatpush.bf16.msra.mxu0 %v608
  %803 = vmatpush.bf16.msra.mxu0 %v607
  %804 = vmatpush.bf16.msra.mxu0 %v606
  %805 = vmatpush.bf16.msra.mxu0 %v605
  %806 = vmatpush.bf16.msra.mxu0 %v604
  %807 = vmatpush.bf16.msra.mxu0 %v603
  %808 = vmatpush.bf16.msra.mxu0 %v602
  %809 = vmatmul.bf16.gmra.mxu0 %v243
  %v810 = vpop.f32.mrf.mxu0
  %v811 = vadd.f32 %v792, %v810
  %v812 = vpop.f32.mrf.mxu0
  %v813 = vadd.f32 %v794, %v812
  %814 = vmatmul.bf16.gmra.mxu0 %v252
  %v815 = vpop.f32.mrf.mxu0
  %v816 = vadd.f32 %v797, %v815
  %v817 = vpop.f32.mrf.mxu0
  %v818 = vadd.f32 %v799, %v817
  %819 = vdwg.mxu0
  %820 = vmatpush.bf16.msra.mxu0 %v617
  %821 = vmatpush.bf16.msra.mxu0 %v616
  %822 = vmatpush.bf16.msra.mxu0 %v615
  %823 = vmatpush.bf16.msra.mxu0 %v614
  %824 = vmatpush.bf16.msra.mxu0 %v613
  %825 = vmatpush.bf16.msra.mxu0 %v612
  %826 = vmatpush.bf16.msra.mxu0 %v611
  %827 = vmatpush.bf16.msra.mxu0 %v610
  %828 = vmatmul.bf16.gmra.mxu0 %v244
  %v829 = vpop.f32.mrf.mxu0
  %v830 = vadd.f32 %v811, %v829
  %v831 = vpop.f32.mrf.mxu0
  %v832 = vadd.f32 %v813, %v831
  %833 = vmatmul.bf16.gmra.mxu0 %v253
  %v834 = vpop.f32.mrf.mxu0
  %v835 = vadd.f32 %v816, %v834
  %v836 = vpop.f32.mrf.mxu0
  %v837 = vadd.f32 %v818, %v836
  %838 = vdwg.mxu0
  %839 = vmatpush.bf16.msra.mxu0 %v625
  %840 = vmatpush.bf16.msra.mxu0 %v624
  %841 = vmatpush.bf16.msra.mxu0 %v623
  %842 = vmatpush.bf16.msra.mxu0 %v622
  %843 = vmatpush.bf16.msra.mxu0 %v621
  %844 = vmatpush.bf16.msra.mxu0 %v620
  %845 = vmatpush.bf16.msra.mxu0 %v619
  %846 = vmatpush.bf16.msra.mxu0 %v618
  %847 = vmatmul.bf16.gmra.mxu0 %v245
  %v848 = vpop.f32.mrf.mxu0
  %v849 = vadd.f32 %v830, %v848
  %v850 = vpop.f32.mrf.mxu0
  %v851 = vadd.f32 %v832, %v850
  %852 = vmatmul.bf16.gmra.mxu0 %v254
  %v853 = vpop.f32.mrf.mxu0
  %v854 = vadd.f32 %v835, %v853
  %v855 = vpop.f32.mrf.mxu0
  %v856 = vadd.f32 %v837, %v855
  %857 = vdwg.mxu0
  %858 = vmatpush.bf16.msra.mxu0 %v633
  %859 = vmatpush.bf16.msra.mxu0 %v632
  %860 = vmatpush.bf16.msra.mxu0 %v631
  %861 = vmatpush.bf16.msra.mxu0 %v630
  %862 = vmatpush.bf16.msra.mxu0 %v629
  %863 = vmatpush.bf16.msra.mxu0 %v628
  %864 = vmatpush.bf16.msra.mxu0 %v627
  %865 = vmatpush.bf16.msra.mxu0 %v626
  %866 = vmatmul.bf16.gmra.mxu0 %v246
  %v867 = vpop.f32.mrf.mxu0
  %v868 = vadd.f32 %v849, %v867
  %v869 = vpop.f32.mrf.mxu0
  %v870 = vadd.f32 %v851, %v869
  %871 = vmatmul.bf16.gmra.mxu0 %v255
  %v872 = vpop.f32.mrf.mxu0
  %v873 = vadd.f32 %v854, %v872
  %v874 = vpop.f32.mrf.mxu0
  %v875 = vadd.f32 %v856, %v874
  %876 = vdwg.mxu0
  %v877 = vmax.f32 %v868, 0.0
  %v878 = vmax.f32 %v870, 0.0
  %v879 = vmax.f32 %v873, 0.0
  %v880 = vmax.f32 %v875, 0.0
  %v881 = vld [vmem:[%s3] sm:$0xff]
  %v882 = vld [vmem:[%s3 + $0x8] sm:$0xff]
  %v883 = vld [vmem:[%s3 + $0x10] sm:$0xff]
  %v884 = vld [vmem:[%s3 + $0x18] sm:$0xff]
  %v885 = vpack.c.bf16 %v878, %v877
  %v886 = vpack.c.bf16 %v880, %v879
  %v887 = vld [vmem:[%s2] sm:$0xf]
  %v888 = vld [vmem:[%s2 + $0x4] sm:$0xf]
  %v891 = vunpack.c.l.b16 %v887
  %v892 = vunpack.c.l.b16 %v888
  %v893 = vpack.c.b16 %v892, %v891
  %vm895 = vcmask 130048
  %v897 = vsel %vm895, %v885, 0
  %v900 = vsel %vm895, %v886, 0
  %902 = vmatpush.bf16.msra.mxu0 0
  %903 = vmatpush.bf16.msra.mxu0 0
  %904 = vmatpush.bf16.msra.mxu0 0
  %905 = vmatpush.bf16.msra.mxu0 0
  %906 = vmatpush.bf16.msra.mxu0 0
  %907 = vmatpush.bf16.msra.mxu0 0
  %908 = vmatpush.bf16.msra.mxu0 0
  %909 = vmatpush.bf16.msra.mxu0 %v893
  %910 = vmatmul.bf16.gmra.mxu0 %v897
  %v911 = vpop.f32.mrf.mxu0
  %v912 = vadd.f32 0.0, %v911
  %v913 = vpop.f32.mrf.mxu0
  %v914 = vadd.f32 0.0, %v913
  %915 = vmatmul.bf16.gmra.mxu0 %v900
  %v916 = vpop.f32.mrf.mxu0
  %v917 = vadd.f32 0.0, %v916
  %v918 = vpop.f32.mrf.mxu0
  %v919 = vadd.f32 0.0, %v918
  %920 = vdwg.mxu0
  %v921 = vadd.f32 %v881, %v912
  %v922 = vadd.f32 %v882, %v914
  %v923 = vadd.f32 %v883, %v917
  %v924 = vadd.f32 %v884, %v919
  %925 = vst [vmem:[%s4] sm:$0xff] %v921
  %926 = vst [vmem:[%s4 + $0x8] sm:$0xff] %v922
  %927 = vst [vmem:[%s4 + $0x10] sm:$0xff] %v923
  %928 = vst [vmem:[%s4 + $0x18] sm:$0xff] %v924
  // Predicated region
  $region18: #{encoder_bot_forward.8} parent=0 // pred_check
    _
  $region19: #{encoder_bot_forward.8} parent=0 // pred_check_branch
    %930 = sbr.rel (0) target = $region21
  $region20: #{encoder_bot_forward.8} parent=0 // pred_region
    _
  $region21: #{encoder_bot_forward.8} parent=0 // pred_fallthru
    _
  // Predicated region
  $region22: #{encoder_bot_forward.8} parent=0 // pred_check
    _
  $region23: #{encoder_bot_forward.8} parent=0 // pred_check_branch
    %932 = sbr.rel (0) target = $region25
  $region24: #{encoder_bot_forward.8} parent=0 // pred_region
    _
  $region25: #{encoder_bot_forward.8} parent=0 // pred_fallthru
    _

// kernel: encoder_bot_forward.9
$region0: #{encoder_bot_forward.9}
  #allocation0 [shape = 'u32[]', space=smem, size = 0x4, offset = 0x4, fixed_abs, tag = 'smem constant byte address 0x4 - core index']
  #allocation1 [shape = 'u32[72,128]{1,0:T(1,128)}', space=vmem, size = 0x9000, scoped, tag = 'internal scratch']
  %s0 = inlined_call_operand.vmem [shape: bf16[32,1152], index: 0, kind: input, shape index: {}]
  %s1 = inlined_call_operand.vmem [shape: bf16[1152,16], index: 1, kind: input, shape index: {}]
  %s2 = inlined_call_operand.vmem [shape: bf16[16,128], index: 2, kind: input, shape index: {}]
  %s3 = inlined_call_operand.vmem [shape: f32[32,128], index: 3, kind: input, shape index: {}, may-alias: {3,4}]
  %s4 = inlined_call_operand.vmem [shape: f32[32,128], index: 4, kind: output, shape index: {}, may-alias: {3,4}]
  %s5 = sld [smem:[#allocation0]]
  $region26: #{encoder_bot_forward.9} parent=0
    _
  %s7 = ssub.s32 1, %s5
  %s8 = scalar_select 0, %s7, %s5
  // Predicated region
  $region2: #{encoder_bot_forward.9} parent=0 // pred_check
    _
  $region3: #{encoder_bot_forward.9} parent=0 // pred_check_branch
    %10 = sbr.rel (0) target = $region5
  $region4: #{encoder_bot_forward.9} parent=0 // pred_region
    _
  $region5: #{encoder_bot_forward.9} parent=0 // pred_fallthru
    _
  // Predicated region
  $region6: #{encoder_bot_forward.9} parent=0 // pred_check
    _
  $region7: #{encoder_bot_forward.9} parent=0 // pred_check_branch
    %12 = sbr.rel (0) target = $region9
  $region8: #{encoder_bot_forward.9} parent=0 // pred_region
    _
  $region9: #{encoder_bot_forward.9} parent=0 // pred_fallthru
    _
  // Predicated region
  $region10: #{encoder_bot_forward.9} parent=0 // pred_check
    _
  $region11: #{encoder_bot_forward.9} parent=0 // pred_check_branch
    %14 = sbr.rel (0) target = $region13
  $region12: #{encoder_bot_forward.9} parent=0 // pred_region
    _
  $region13: #{encoder_bot_forward.9} parent=0 // pred_fallthru
    _
  // Predicated region
  $region14: #{encoder_bot_forward.9} parent=0 // pred_check
    _
  $region15: #{encoder_bot_forward.9} parent=0 // pred_check_branch
    %16 = sbr.rel (0) target = $region17
  $region16: #{encoder_bot_forward.9} parent=0 // pred_region
    _
  $region17: #{encoder_bot_forward.9} parent=0 // pred_fallthru
    _
  %v18 = vld [vmem:[%s0] sm:$0xff]
  %v19 = vld [vmem:[%s0 + $0x8] sm:$0xff]
  %v20 = vld [vmem:[%s0 + $0x10] sm:$0xff]
  %v21 = vld [vmem:[%s0 + $0x18] sm:$0xff]
  %v22 = vld [vmem:[%s0 + $0x20] sm:$0xf]
  %v23 = vld [vmem:[%s0 + $0x24] sm:$0xff]
  %v24 = vld [vmem:[%s0 + $0x2c] sm:$0xff]
  %v25 = vld [vmem:[%s0 + $0x34] sm:$0xff]
  %v26 = vld [vmem:[%s0 + $0x3c] sm:$0xff]
  %v27 = vld [vmem:[%s0 + $0x44] sm:$0xf]
  %v28 = vld [vmem:[%s0 + $0x48] sm:$0xff]
  %v29 = vld [vmem:[%s0 + $0x50] sm:$0xff]
  %v30 = vld [vmem:[%s0 + $0x58] sm:$0xff]
  %v31 = vld [vmem:[%s0 + $0x60] sm:$0xff]
  %v32 = vld [vmem:[%s0 + $0x68] sm:$0xf]
  %v33 = vld [vmem:[%s0 + $0x6c] sm:$0xff]
  %v34 = vld [vmem:[%s0 + $0x74] sm:$0xff]
  %v35 = vld [vmem:[%s0 + $0x7c] sm:$0xff]
  %v36 = vld [vmem:[%s0 + $0x84] sm:$0xff]
  %v37 = vld [vmem:[%s0 + $0x8c] sm:$0xf]
  %v38 = vld [vmem:[%s1] sm:$0xf]
  %v39 = vld [vmem:[%s1 + $0x4] sm:$0xf]
  %v40 = vld [vmem:[%s1 + $0x8] sm:$0xf]
  %v41 = vld [vmem:[%s1 + $0xc] sm:$0xf]
  %v42 = vld [vmem:[%s1 + $0x10] sm:$0xf]
  %v43 = vld [vmem:[%s1 + $0x14] sm:$0xf]
  %v44 = vld [vmem:[%s1 + $0x18] sm:$0xf]
  %v45 = vld [vmem:[%s1 + $0x1c] sm:$0xf]
  %v46 = vld [vmem:[%s1 + $0x20] sm:$0xf]
  %v47 = vld [vmem:[%s1 + $0x24] sm:$0xf]
  %v48 = vld [vmem:[%s1 + $0x28] sm:$0xf]
  %v49 = vld [vmem:[%s1 + $0x2c] sm:$0xf]
  %v50 = vld [vmem:[%s1 + $0x30] sm:$0xf]
  %v51 = vld [vmem:[%s1 + $0x34] sm:$0xf]
  %v52 = vld [vmem:[%s1 + $0x38] sm:$0xf]
  %v53 = vld [vmem:[%s1 + $0x3c] sm:$0xf]
  %v54 = vld [vmem:[%s1 + $0x40] sm:$0xf]
  %v55 = vld [vmem:[%s1 + $0x44] sm:$0xf]
  %v56 = vld [vmem:[%s1 + $0x48] sm:$0xf]
  %v57 = vld [vmem:[%s1 + $0x4c] sm:$0xf]
  %v58 = vld [vmem:[%s1 + $0x50] sm:$0xf]
  %v59 = vld [vmem:[%s1 + $0x54] sm:$0xf]
  %v60 = vld [vmem:[%s1 + $0x58] sm:$0xf]
  %v61 = vld [vmem:[%s1 + $0x5c] sm:$0xf]
  %v62 = vld [vmem:[%s1 + $0x60] sm:$0xf]
  %v63 = vld [vmem:[%s1 + $0x64] sm:$0xf]
  %v64 = vld [vmem:[%s1 + $0x68] sm:$0xf]
  %v65 = vld [vmem:[%s1 + $0x6c] sm:$0xf]
  %v66 = vld [vmem:[%s1 + $0x70] sm:$0xf]
  %v67 = vld [vmem:[%s1 + $0x74] sm:$0xf]
  %v68 = vld [vmem:[%s1 + $0x78] sm:$0xf]
  %v69 = vld [vmem:[%s1 + $0x7c] sm:$0xf]
  %v70 = vld [vmem:[%s1 + $0x80] sm:$0xf]
  %v71 = vld [vmem:[%s1 + $0x84] sm:$0xf]
  %v72 = vld [vmem:[%s1 + $0x88] sm:$0xf]
  %v73 = vld [vmem:[%s1 + $0x8c] sm:$0xf]
  %v74 = vld [vmem:[%s1 + $0x90] sm:$0xf]
  %v75 = vld [vmem:[%s1 + $0x94] sm:$0xf]
  %v76 = vld [vmem:[%s1 + $0x98] sm:$0xf]
  %v77 = vld [vmem:[%s1 + $0x9c] sm:$0xf]
  %v78 = vld [vmem:[%s1 + $0xa0] sm:$0xf]
  %v79 = vld [vmem:[%s1 + $0xa4] sm:$0xf]
  %v80 = vld [vmem:[%s1 + $0xa8] sm:$0xf]
  %v81 = vld [vmem:[%s1 + $0xac] sm:$0xf]
  %v82 = vld [vmem:[%s1 + $0xb0] sm:$0xf]
  %v83 = vld [vmem:[%s1 + $0xb4] sm:$0xf]
  %v84 = vld [vmem:[%s1 + $0xb8] sm:$0xf]
  %v85 = vld [vmem:[%s1 + $0xbc] sm:$0xf]
  %v86 = vld [vmem:[%s1 + $0xc0] sm:$0xf]
  %v87 = vld [vmem:[%s1 + $0xc4] sm:$0xf]
  %v88 = vld [vmem:[%s1 + $0xc8] sm:$0xf]
  %v89 = vld [vmem:[%s1 + $0xcc] sm:$0xf]
  %v90 = vld [vmem:[%s1 + $0xd0] sm:$0xf]
  %v91 = vld [vmem:[%s1 + $0xd4] sm:$0xf]
  %v92 = vld [vmem:[%s1 + $0xd8] sm:$0xf]
  %v93 = vld [vmem:[%s1 + $0xdc] sm:$0xf]
  %v94 = vld [vmem:[%s1 + $0xe0] sm:$0xf]
  %v95 = vld [vmem:[%s1 + $0xe4] sm:$0xf]
  %v96 = vld [vmem:[%s1 + $0xe8] sm:$0xf]
  %v97 = vld [vmem:[%s1 + $0xec] sm:$0xf]
  %v98 = vld [vmem:[%s1 + $0xf0] sm:$0xf]
  %v99 = vld [vmem:[%s1 + $0xf4] sm:$0xf]
  %v100 = vld [vmem:[%s1 + $0xf8] sm:$0xf]
  %v101 = vld [vmem:[%s1 + $0xfc] sm:$0xf]
  %v102 = vld [vmem:[%s1 + $0x100] sm:$0xf]
  %v103 = vld [vmem:[%s1 + $0x104] sm:$0xf]
  %v104 = vld [vmem:[%s1 + $0x108] sm:$0xf]
  %v105 = vld [vmem:[%s1 + $0x10c] sm:$0xf]
  %v106 = vld [vmem:[%s1 + $0x110] sm:$0xf]
  %v107 = vld [vmem:[%s1 + $0x114] sm:$0xf]
  %v108 = vld [vmem:[%s1 + $0x118] sm:$0xf]
  %v109 = vld [vmem:[%s1 + $0x11c] sm:$0xf]
  %v110 = vld [vmem:[%s1 + $0x120] sm:$0xf]
  %v111 = vld [vmem:[%s1 + $0x124] sm:$0xf]
  %v112 = vld [vmem:[%s1 + $0x128] sm:$0xf]
  %v113 = vld [vmem:[%s1 + $0x12c] sm:$0xf]
  %v114 = vld [vmem:[%s1 + $0x130] sm:$0xf]
  %v115 = vld [vmem:[%s1 + $0x134] sm:$0xf]
  %v116 = vld [vmem:[%s1 + $0x138] sm:$0xf]
  %v117 = vld [vmem:[%s1 + $0x13c] sm:$0xf]
  %v118 = vld [vmem:[%s1 + $0x140] sm:$0xf]
  %v119 = vld [vmem:[%s1 + $0x144] sm:$0xf]
  %v120 = vld [vmem:[%s1 + $0x148] sm:$0xf]
  %v121 = vld [vmem:[%s1 + $0x14c] sm:$0xf]
  %v122 = vld [vmem:[%s1 + $0x150] sm:$0xf]
  %v123 = vld [vmem:[%s1 + $0x154] sm:$0xf]
  %v124 = vld [vmem:[%s1 + $0x158] sm:$0xf]
  %v125 = vld [vmem:[%s1 + $0x15c] sm:$0xf]
  %v126 = vld [vmem:[%s1 + $0x160] sm:$0xf]
  %v127 = vld [vmem:[%s1 + $0x164] sm:$0xf]
  %v128 = vld [vmem:[%s1 + $0x168] sm:$0xf]
  %v129 = vld [vmem:[%s1 + $0x16c] sm:$0xf]
  %v130 = vld [vmem:[%s1 + $0x170] sm:$0xf]
  %v131 = vld [vmem:[%s1 + $0x174] sm:$0xf]
  %v132 = vld [vmem:[%s1 + $0x178] sm:$0xf]
  %v133 = vld [vmem:[%s1 + $0x17c] sm:$0xf]
  %v134 = vld [vmem:[%s1 + $0x180] sm:$0xf]
  %v135 = vld [vmem:[%s1 + $0x184] sm:$0xf]
  %v136 = vld [vmem:[%s1 + $0x188] sm:$0xf]
  %v137 = vld [vmem:[%s1 + $0x18c] sm:$0xf]
  %v138 = vld [vmem:[%s1 + $0x190] sm:$0xf]
  %v139 = vld [vmem:[%s1 + $0x194] sm:$0xf]
  %v140 = vld [vmem:[%s1 + $0x198] sm:$0xf]
  %v141 = vld [vmem:[%s1 + $0x19c] sm:$0xf]
  %v142 = vld [vmem:[%s1 + $0x1a0] sm:$0xf]
  %v143 = vld [vmem:[%s1 + $0x1a4] sm:$0xf]
  %v144 = vld [vmem:[%s1 + $0x1a8] sm:$0xf]
  %v145 = vld [vmem:[%s1 + $0x1ac] sm:$0xf]
  %v146 = vld [vmem:[%s1 + $0x1b0] sm:$0xf]
  %v147 = vld [vmem:[%s1 + $0x1b4] sm:$0xf]
  %v148 = vld [vmem:[%s1 + $0x1b8] sm:$0xf]
  %v149 = vld [vmem:[%s1 + $0x1bc] sm:$0xf]
  %v150 = vld [vmem:[%s1 + $0x1c0] sm:$0xf]
  %v151 = vld [vmem:[%s1 + $0x1c4] sm:$0xf]
  %v152 = vld [vmem:[%s1 + $0x1c8] sm:$0xf]
  %v153 = vld [vmem:[%s1 + $0x1cc] sm:$0xf]
  %v154 = vld [vmem:[%s1 + $0x1d0] sm:$0xf]
  %v155 = vld [vmem:[%s1 + $0x1d4] sm:$0xf]
  %v156 = vld [vmem:[%s1 + $0x1d8] sm:$0xf]
  %v157 = vld [vmem:[%s1 + $0x1dc] sm:$0xf]
  %v158 = vld [vmem:[%s1 + $0x1e0] sm:$0xf]
  %v159 = vld [vmem:[%s1 + $0x1e4] sm:$0xf]
  %v160 = vld [vmem:[%s1 + $0x1e8] sm:$0xf]
  %v161 = vld [vmem:[%s1 + $0x1ec] sm:$0xf]
  %v162 = vld [vmem:[%s1 + $0x1f0] sm:$0xf]
  %v163 = vld [vmem:[%s1 + $0x1f4] sm:$0xf]
  %v164 = vld [vmem:[%s1 + $0x1f8] sm:$0xf]
  %v165 = vld [vmem:[%s1 + $0x1fc] sm:$0xf]
  %v166 = vld [vmem:[%s1 + $0x200] sm:$0xf]
  %v167 = vld [vmem:[%s1 + $0x204] sm:$0xf]
  %v168 = vld [vmem:[%s1 + $0x208] sm:$0xf]
  %v169 = vld [vmem:[%s1 + $0x20c] sm:$0xf]
  %v170 = vld [vmem:[%s1 + $0x210] sm:$0xf]
  %v171 = vld [vmem:[%s1 + $0x214] sm:$0xf]
  %v172 = vld [vmem:[%s1 + $0x218] sm:$0xf]
  %v173 = vld [vmem:[%s1 + $0x21c] sm:$0xf]
  %v174 = vld [vmem:[%s1 + $0x220] sm:$0xf]
  %v175 = vld [vmem:[%s1 + $0x224] sm:$0xf]
  %v176 = vld [vmem:[%s1 + $0x228] sm:$0xf]
  %v177 = vld [vmem:[%s1 + $0x22c] sm:$0xf]
  %v178 = vld [vmem:[%s1 + $0x230] sm:$0xf]
  %v179 = vld [vmem:[%s1 + $0x234] sm:$0xf]
  %v180 = vld [vmem:[%s1 + $0x238] sm:$0xf]
  %v181 = vld [vmem:[%s1 + $0x23c] sm:$0xf]
  %v202 = vunpack.c.l.b16 %v18
  %v203 = vunpack.c.h.b16 %v18
  %v204 = vunpack.c.l.b16 %v19
  %v205 = vunpack.c.h.b16 %v19
  %v206 = vunpack.c.l.b16 %v20
  %v207 = vunpack.c.h.b16 %v20
  %v208 = vunpack.c.l.b16 %v21
  %v209 = vunpack.c.h.b16 %v21
  %v210 = vunpack.c.l.b16 %v22
  %v211 = vunpack.c.l.b16 %v23
  %v212 = vunpack.c.h.b16 %v23
  %v213 = vunpack.c.l.b16 %v24
  %v214 = vunpack.c.h.b16 %v24
  %v215 = vunpack.c.l.b16 %v25
  %v216 = vunpack.c.h.b16 %v25
  %v217 = vunpack.c.l.b16 %v26
  %v218 = vunpack.c.h.b16 %v26
  %v219 = vunpack.c.l.b16 %v27
  %v220 = vunpack.c.l.b16 %v28
  %v221 = vunpack.c.h.b16 %v28
  %v222 = vunpack.c.l.b16 %v29
  %v223 = vunpack.c.h.b16 %v29
  %v224 = vunpack.c.l.b16 %v30
  %v225 = vunpack.c.h.b16 %v30
  %v226 = vunpack.c.l.b16 %v31
  %v227 = vunpack.c.h.b16 %v31
  %v228 = vunpack.c.l.b16 %v32
  %v229 = vunpack.c.l.b16 %v33
  %v230 = vunpack.c.h.b16 %v33
  %v231 = vunpack.c.l.b16 %v34
  %v232 = vunpack.c.h.b16 %v34
  %v233 = vunpack.c.l.b16 %v35
  %v234 = vunpack.c.h.b16 %v35
  %v235 = vunpack.c.l.b16 %v36
  %v236 = vunpack.c.h.b16 %v36
  %v237 = vunpack.c.l.b16 %v37
  %v238 = vpack.c.b16 %v211, %v202
  %v239 = vpack.c.b16 %v212, %v203
  %v240 = vpack.c.b16 %v213, %v204
  %v241 = vpack.c.b16 %v214, %v205
  %v242 = vpack.c.b16 %v215, %v206
  %v243 = vpack.c.b16 %v216, %v207
  %v244 = vpack.c.b16 %v217, %v208
  %v245 = vpack.c.b16 %v218, %v209
  %v246 = vpack.c.b16 %v219, %v210
  %v247 = vpack.c.b16 %v229, %v220
  %v248 = vpack.c.b16 %v230, %v221
  %v249 = vpack.c.b16 %v231, %v222
  %v250 = vpack.c.b16 %v232, %v223
  %v251 = vpack.c.b16 %v233, %v224
  %v252 = vpack.c.b16 %v234, %v225
  %v253 = vpack.c.b16 %v235, %v226
  %v254 = vpack.c.b16 %v236, %v227
  %v255 = vpack.c.b16 %v237, %v228
  %v418 = vunpack.c.l.b16 %v38
  %v419 = vunpack.c.l.b16 %v39
  %v420 = vunpack.c.l.b16 %v40
  %v421 = vunpack.c.l.b16 %v41
  %v422 = vunpack.c.l.b16 %v42
  %v423 = vunpack.c.l.b16 %v43
  %v424 = vunpack.c.l.b16 %v44
  %v425 = vunpack.c.l.b16 %v45
  %v426 = vunpack.c.l.b16 %v46
  %v427 = vunpack.c.l.b16 %v47
  %v428 = vunpack.c.l.b16 %v48
  %v429 = vunpack.c.l.b16 %v49
  %v430 = vunpack.c.l.b16 %v50
  %v431 = vunpack.c.l.b16 %v51
  %v432 = vunpack.c.l.b16 %v52
  %v433 = vunpack.c.l.b16 %v53
  %v434 = vunpack.c.l.b16 %v54
  %v435 = vunpack.c.l.b16 %v55
  %v436 = vunpack.c.l.b16 %v56
  %v437 = vunpack.c.l.b16 %v57
  %v438 = vunpack.c.l.b16 %v58
  %v439 = vunpack.c.l.b16 %v59
  %v440 = vunpack.c.l.b16 %v60
  %v441 = vunpack.c.l.b16 %v61
  %v442 = vunpack.c.l.b16 %v62
  %v443 = vunpack.c.l.b16 %v63
  %v444 = vunpack.c.l.b16 %v64
  %v445 = vunpack.c.l.b16 %v65
  %v446 = vunpack.c.l.b16 %v66
  %v447 = vunpack.c.l.b16 %v67
  %v448 = vunpack.c.l.b16 %v68
  %v449 = vunpack.c.l.b16 %v69
  %v450 = vunpack.c.l.b16 %v70
  %v451 = vunpack.c.l.b16 %v71
  %v452 = vunpack.c.l.b16 %v72
  %v453 = vunpack.c.l.b16 %v73
  %v454 = vunpack.c.l.b16 %v74
  %v455 = vunpack.c.l.b16 %v75
  %v456 = vunpack.c.l.b16 %v76
  %v457 = vunpack.c.l.b16 %v77
  %v458 = vunpack.c.l.b16 %v78
  %v459 = vunpack.c.l.b16 %v79
  %v460 = vunpack.c.l.b16 %v80
  %v461 = vunpack.c.l.b16 %v81
  %v462 = vunpack.c.l.b16 %v82
  %v463 = vunpack.c.l.b16 %v83
  %v464 = vunpack.c.l.b16 %v84
  %v465 = vunpack.c.l.b16 %v85
  %v466 = vunpack.c.l.b16 %v86
  %v467 = vunpack.c.l.b16 %v87
  %v468 = vunpack.c.l.b16 %v88
  %v469 = vunpack.c.l.b16 %v89
  %v470 = vunpack.c.l.b16 %v90
  %v471 = vunpack.c.l.b16 %v91
  %v472 = vunpack.c.l.b16 %v92
  %v473 = vunpack.c.l.b16 %v93
  %v474 = vunpack.c.l.b16 %v94
  %v475 = vunpack.c.l.b16 %v95
  %v476 = vunpack.c.l.b16 %v96
  %v477 = vunpack.c.l.b16 %v97
  %v478 = vunpack.c.l.b16 %v98
  %v479 = vunpack.c.l.b16 %v99
  %v480 = vunpack.c.l.b16 %v100
  %v481 = vunpack.c.l.b16 %v101
  %v482 = vunpack.c.l.b16 %v102
  %v483 = vunpack.c.l.b16 %v103
  %v484 = vunpack.c.l.b16 %v104
  %v485 = vunpack.c.l.b16 %v105
  %v486 = vunpack.c.l.b16 %v106
  %v487 = vunpack.c.l.b16 %v107
  %v488 = vunpack.c.l.b16 %v108
  %v489 = vunpack.c.l.b16 %v109
  %v490 = vunpack.c.l.b16 %v110
  %v491 = vunpack.c.l.b16 %v111
  %v492 = vunpack.c.l.b16 %v112
  %v493 = vunpack.c.l.b16 %v113
  %v494 = vunpack.c.l.b16 %v114
  %v495 = vunpack.c.l.b16 %v115
  %v496 = vunpack.c.l.b16 %v116
  %v497 = vunpack.c.l.b16 %v117
  %v498 = vunpack.c.l.b16 %v118
  %v499 = vunpack.c.l.b16 %v119
  %v500 = vunpack.c.l.b16 %v120
  %v501 = vunpack.c.l.b16 %v121
  %v502 = vunpack.c.l.b16 %v122
  %v503 = vunpack.c.l.b16 %v123
  %v504 = vunpack.c.l.b16 %v124
  %v505 = vunpack.c.l.b16 %v125
  %v506 = vunpack.c.l.b16 %v126
  %v507 = vunpack.c.l.b16 %v127
  %v508 = vunpack.c.l.b16 %v128
  %v509 = vunpack.c.l.b16 %v129
  %v510 = vunpack.c.l.b16 %v130
  %v511 = vunpack.c.l.b16 %v131
  %v512 = vunpack.c.l.b16 %v132
  %v513 = vunpack.c.l.b16 %v133
  %v514 = vunpack.c.l.b16 %v134
  %v515 = vunpack.c.l.b16 %v135
  %v516 = vunpack.c.l.b16 %v136
  %v517 = vunpack.c.l.b16 %v137
  %v518 = vunpack.c.l.b16 %v138
  %v519 = vunpack.c.l.b16 %v139
  %v520 = vunpack.c.l.b16 %v140
  %v521 = vunpack.c.l.b16 %v141
  %v522 = vunpack.c.l.b16 %v142
  %v523 = vunpack.c.l.b16 %v143
  %v524 = vunpack.c.l.b16 %v144
  %v525 = vunpack.c.l.b16 %v145
  %v526 = vunpack.c.l.b16 %v146
  %v527 = vunpack.c.l.b16 %v147
  %v528 = vunpack.c.l.b16 %v148
  %v529 = vunpack.c.l.b16 %v149
  %v530 = vunpack.c.l.b16 %v150
  %v531 = vunpack.c.l.b16 %v151
  %v532 = vunpack.c.l.b16 %v152
  %v533 = vunpack.c.l.b16 %v153
  %v534 = vunpack.c.l.b16 %v154
  %v535 = vunpack.c.l.b16 %v155
  %v536 = vunpack.c.l.b16 %v156
  %v537 = vunpack.c.l.b16 %v157
  %v538 = vunpack.c.l.b16 %v158
  %v539 = vunpack.c.l.b16 %v159
  %v540 = vunpack.c.l.b16 %v160
  %v541 = vunpack.c.l.b16 %v161
  %v542 = vunpack.c.l.b16 %v162
  %v543 = vunpack.c.l.b16 %v163
  %v544 = vunpack.c.l.b16 %v164
  %v545 = vunpack.c.l.b16 %v165
  %v546 = vunpack.c.l.b16 %v166
  %v547 = vunpack.c.l.b16 %v167
  %v548 = vunpack.c.l.b16 %v168
  %v549 = vunpack.c.l.b16 %v169
  %v550 = vunpack.c.l.b16 %v170
  %v551 = vunpack.c.l.b16 %v171
  %v552 = vunpack.c.l.b16 %v172
  %v553 = vunpack.c.l.b16 %v173
  %v554 = vunpack.c.l.b16 %v174
  %v555 = vunpack.c.l.b16 %v175
  %v556 = vunpack.c.l.b16 %v176
  %v557 = vunpack.c.l.b16 %v177
  %v558 = vunpack.c.l.b16 %v178
  %v559 = vunpack.c.l.b16 %v179
  %v560 = vunpack.c.l.b16 %v180
  %v561 = vunpack.c.l.b16 %v181
  %v562 = vpack.c.b16 %v419, %v418
  %v563 = vpack.c.b16 %v421, %v420
  %v564 = vpack.c.b16 %v423, %v422
  %v565 = vpack.c.b16 %v425, %v424
  %v566 = vpack.c.b16 %v427, %v426
  %v567 = vpack.c.b16 %v429, %v428
  %v568 = vpack.c.b16 %v431, %v430
  %v569 = vpack.c.b16 %v433, %v432
  %v570 = vpack.c.b16 %v435, %v434
  %v571 = vpack.c.b16 %v437, %v436
  %v572 = vpack.c.b16 %v439, %v438
  %v573 = vpack.c.b16 %v441, %v440
  %v574 = vpack.c.b16 %v443, %v442
  %v575 = vpack.c.b16 %v445, %v444
  %v576 = vpack.c.b16 %v447, %v446
  %v577 = vpack.c.b16 %v449, %v448
  %v578 = vpack.c.b16 %v451, %v450
  %v579 = vpack.c.b16 %v453, %v452
  %v580 = vpack.c.b16 %v455, %v454
  %v581 = vpack.c.b16 %v457, %v456
  %v582 = vpack.c.b16 %v459, %v458
  %v583 = vpack.c.b16 %v461, %v460
  %v584 = vpack.c.b16 %v463, %v462
  %v585 = vpack.c.b16 %v465, %v464
  %v586 = vpack.c.b16 %v467, %v466
  %v587 = vpack.c.b16 %v469, %v468
  %v588 = vpack.c.b16 %v471, %v470
  %v589 = vpack.c.b16 %v473, %v472
  %v590 = vpack.c.b16 %v475, %v474
  %v591 = vpack.c.b16 %v477, %v476
  %v592 = vpack.c.b16 %v479, %v478
  %v593 = vpack.c.b16 %v481, %v480
  %v594 = vpack.c.b16 %v483, %v482
  %v595 = vpack.c.b16 %v485, %v484
  %v596 = vpack.c.b16 %v487, %v486
  %v597 = vpack.c.b16 %v489, %v488
  %v598 = vpack.c.b16 %v491, %v490
  %v599 = vpack.c.b16 %v493, %v492
  %v600 = vpack.c.b16 %v495, %v494
  %v601 = vpack.c.b16 %v497, %v496
  %v602 = vpack.c.b16 %v499, %v498
  %v603 = vpack.c.b16 %v501, %v500
  %v604 = vpack.c.b16 %v503, %v502
  %v605 = vpack.c.b16 %v505, %v504
  %v606 = vpack.c.b16 %v507, %v506
  %v607 = vpack.c.b16 %v509, %v508
  %v608 = vpack.c.b16 %v511, %v510
  %v609 = vpack.c.b16 %v513, %v512
  %v610 = vpack.c.b16 %v515, %v514
  %v611 = vpack.c.b16 %v517, %v516
  %v612 = vpack.c.b16 %v519, %v518
  %v613 = vpack.c.b16 %v521, %v520
  %v614 = vpack.c.b16 %v523, %v522
  %v615 = vpack.c.b16 %v525, %v524
  %v616 = vpack.c.b16 %v527, %v526
  %v617 = vpack.c.b16 %v529, %v528
  %v618 = vpack.c.b16 %v531, %v530
  %v619 = vpack.c.b16 %v533, %v532
  %v620 = vpack.c.b16 %v535, %v534
  %v621 = vpack.c.b16 %v537, %v536
  %v622 = vpack.c.b16 %v539, %v538
  %v623 = vpack.c.b16 %v541, %v540
  %v624 = vpack.c.b16 %v543, %v542
  %v625 = vpack.c.b16 %v545, %v544
  %v626 = vpack.c.b16 %v547, %v546
  %v627 = vpack.c.b16 %v549, %v548
  %v628 = vpack.c.b16 %v551, %v550
  %v629 = vpack.c.b16 %v553, %v552
  %v630 = vpack.c.b16 %v555, %v554
  %v631 = vpack.c.b16 %v557, %v556
  %v632 = vpack.c.b16 %v559, %v558
  %v633 = vpack.c.b16 %v561, %v560
  %706 = vmatpush.bf16.msra.mxu0 %v569
  %707 = vmatpush.bf16.msra.mxu0 %v568
  %708 = vmatpush.bf16.msra.mxu0 %v567
  %709 = vmatpush.bf16.msra.mxu0 %v566
  %710 = vmatpush.bf16.msra.mxu0 %v565
  %711 = vmatpush.bf16.msra.mxu0 %v564
  %712 = vmatpush.bf16.msra.mxu0 %v563
  %713 = vmatpush.bf16.msra.mxu0 %v562
  %714 = vmatmul.bf16.gmra.mxu0 %v238
  %v715 = vpop.f32.mrf.mxu0
  %v716 = vadd.f32 0.0, %v715
  %v717 = vpop.f32.mrf.mxu0
  %v718 = vadd.f32 0.0, %v717
  %719 = vmatmul.bf16.gmra.mxu0 %v247
  %v720 = vpop.f32.mrf.mxu0
  %v721 = vadd.f32 0.0, %v720
  %v722 = vpop.f32.mrf.mxu0
  %v723 = vadd.f32 0.0, %v722
  %724 = vdwg.mxu0
  %725 = vmatpush.bf16.msra.mxu0 %v577
  %726 = vmatpush.bf16.msra.mxu0 %v576
  %727 = vmatpush.bf16.msra.mxu0 %v575
  %728 = vmatpush.bf16.msra.mxu0 %v574
  %729 = vmatpush.bf16.msra.mxu0 %v573
  %730 = vmatpush.bf16.msra.mxu0 %v572
  %731 = vmatpush.bf16.msra.mxu0 %v571
  %732 = vmatpush.bf16.msra.mxu0 %v570
  %733 = vmatmul.bf16.gmra.mxu0 %v239
  %v734 = vpop.f32.mrf.mxu0
  %v735 = vadd.f32 %v716, %v734
  %v736 = vpop.f32.mrf.mxu0
  %v737 = vadd.f32 %v718, %v736
  %738 = vmatmul.bf16.gmra.mxu0 %v248
  %v739 = vpop.f32.mrf.mxu0
  %v740 = vadd.f32 %v721, %v739
  %v741 = vpop.f32.mrf.mxu0
  %v742 = vadd.f32 %v723, %v741
  %743 = vdwg.mxu0
  %744 = vmatpush.bf16.msra.mxu0 %v585
  %745 = vmatpush.bf16.msra.mxu0 %v584
  %746 = vmatpush.bf16.msra.mxu0 %v583
  %747 = vmatpush.bf16.msra.mxu0 %v582
  %748 = vmatpush.bf16.msra.mxu0 %v581
  %749 = vmatpush.bf16.msra.mxu0 %v580
  %750 = vmatpush.bf16.msra.mxu0 %v579
  %751 = vmatpush.bf16.msra.mxu0 %v578
  %752 = vmatmul.bf16.gmra.mxu0 %v240
  %v753 = vpop.f32.mrf.mxu0
  %v754 = vadd.f32 %v735, %v753
  %v755 = vpop.f32.mrf.mxu0
  %v756 = vadd.f32 %v737, %v755
  %757 = vmatmul.bf16.gmra.mxu0 %v249
  %v758 = vpop.f32.mrf.mxu0
  %v759 = vadd.f32 %v740, %v758
  %v760 = vpop.f32.mrf.mxu0
  %v761 = vadd.f32 %v742, %v760
  %762 = vdwg.mxu0
  %763 = vmatpush.bf16.msra.mxu0 %v593
  %764 = vmatpush.bf16.msra.mxu0 %v592
  %765 = vmatpush.bf16.msra.mxu0 %v591
  %766 = vmatpush.bf16.msra.mxu0 %v590
  %767 = vmatpush.bf16.msra.mxu0 %v589
  %768 = vmatpush.bf16.msra.mxu0 %v588
  %769 = vmatpush.bf16.msra.mxu0 %v587
  %770 = vmatpush.bf16.msra.mxu0 %v586
  %771 = vmatmul.bf16.gmra.mxu0 %v241
  %v772 = vpop.f32.mrf.mxu0
  %v773 = vadd.f32 %v754, %v772
  %v774 = vpop.f32.mrf.mxu0
  %v775 = vadd.f32 %v756, %v774
  %776 = vmatmul.bf16.gmra.mxu0 %v250
  %v777 = vpop.f32.mrf.mxu0
  %v778 = vadd.f32 %v759, %v777
  %v779 = vpop.f32.mrf.mxu0
  %v780 = vadd.f32 %v761, %v779
  %781 = vdwg.mxu0
  %782 = vmatpush.bf16.msra.mxu0 %v601
  %783 = vmatpush.bf16.msra.mxu0 %v600
  %784 = vmatpush.bf16.msra.mxu0 %v599
  %785 = vmatpush.bf16.msra.mxu0 %v598
  %786 = vmatpush.bf16.msra.mxu0 %v597
  %787 = vmatpush.bf16.msra.mxu0 %v596
  %788 = vmatpush.bf16.msra.mxu0 %v595
  %789 = vmatpush.bf16.msra.mxu0 %v594
  %790 = vmatmul.bf16.gmra.mxu0 %v242
  %v791 = vpop.f32.mrf.mxu0
  %v792 = vadd.f32 %v773, %v791
  %v793 = vpop.f32.mrf.mxu0
  %v794 = vadd.f32 %v775, %v793
  %795 = vmatmul.bf16.gmra.mxu0 %v251
  %v796 = vpop.f32.mrf.mxu0
  %v797 = vadd.f32 %v778, %v796
  %v798 = vpop.f32.mrf.mxu0
  %v799 = vadd.f32 %v780, %v798
  %800 = vdwg.mxu0
  %801 = vmatpush.bf16.msra.mxu0 %v609
  %802 = vmatpush.bf16.msra.mxu0 %v608
  %803 = vmatpush.bf16.msra.mxu0 %v607
  %804 = vmatpush.bf16.msra.mxu0 %v606
  %805 = vmatpush.bf16.msra.mxu0 %v605
  %806 = vmatpush.bf16.msra.mxu0 %v604
  %807 = vmatpush.bf16.msra.mxu0 %v603
  %808 = vmatpush.bf16.msra.mxu0 %v602
  %809 = vmatmul.bf16.gmra.mxu0 %v243
  %v810 = vpop.f32.mrf.mxu0
  %v811 = vadd.f32 %v792, %v810
  %v812 = vpop.f32.mrf.mxu0
  %v813 = vadd.f32 %v794, %v812
  %814 = vmatmul.bf16.gmra.mxu0 %v252
  %v815 = vpop.f32.mrf.mxu0
  %v816 = vadd.f32 %v797, %v815
  %v817 = vpop.f32.mrf.mxu0
  %v818 = vadd.f32 %v799, %v817
  %819 = vdwg.mxu0
  %820 = vmatpush.bf16.msra.mxu0 %v617
  %821 = vmatpush.bf16.msra.mxu0 %v616
  %822 = vmatpush.bf16.msra.mxu0 %v615
  %823 = vmatpush.bf16.msra.mxu0 %v614
  %824 = vmatpush.bf16.msra.mxu0 %v613
  %825 = vmatpush.bf16.msra.mxu0 %v612
  %826 = vmatpush.bf16.msra.mxu0 %v611
  %827 = vmatpush.bf16.msra.mxu0 %v610
  %828 = vmatmul.bf16.gmra.mxu0 %v244
  %v829 = vpop.f32.mrf.mxu0
  %v830 = vadd.f32 %v811, %v829
  %v831 = vpop.f32.mrf.mxu0
  %v832 = vadd.f32 %v813, %v831
  %833 = vmatmul.bf16.gmra.mxu0 %v253
  %v834 = vpop.f32.mrf.mxu0
  %v835 = vadd.f32 %v816, %v834
  %v836 = vpop.f32.mrf.mxu0
  %v837 = vadd.f32 %v818, %v836
  %838 = vdwg.mxu0
  %839 = vmatpush.bf16.msra.mxu0 %v625
  %840 = vmatpush.bf16.msra.mxu0 %v624
  %841 = vmatpush.bf16.msra.mxu0 %v623
  %842 = vmatpush.bf16.msra.mxu0 %v622
  %843 = vmatpush.bf16.msra.mxu0 %v621
  %844 = vmatpush.bf16.msra.mxu0 %v620
  %845 = vmatpush.bf16.msra.mxu0 %v619
  %846 = vmatpush.bf16.msra.mxu0 %v618
  %847 = vmatmul.bf16.gmra.mxu0 %v245
  %v848 = vpop.f32.mrf.mxu0
  %v849 = vadd.f32 %v830, %v848
  %v850 = vpop.f32.mrf.mxu0
  %v851 = vadd.f32 %v832, %v850
  %852 = vmatmul.bf16.gmra.mxu0 %v254
  %v853 = vpop.f32.mrf.mxu0
  %v854 = vadd.f32 %v835, %v853
  %v855 = vpop.f32.mrf.mxu0
  %v856 = vadd.f32 %v837, %v855
  %857 = vdwg.mxu0
  %858 = vmatpush.bf16.msra.mxu0 %v633
  %859 = vmatpush.bf16.msra.mxu0 %v632
  %860 = vmatpush.bf16.msra.mxu0 %v631
  %861 = vmatpush.bf16.msra.mxu0 %v630
  %862 = vmatpush.bf16.msra.mxu0 %v629
  %863 = vmatpush.bf16.msra.mxu0 %v628
  %864 = vmatpush.bf16.msra.mxu0 %v627
  %865 = vmatpush.bf16.msra.mxu0 %v626
  %866 = vmatmul.bf16.gmra.mxu0 %v246
  %v867 = vpop.f32.mrf.mxu0
  %v868 = vadd.f32 %v849, %v867
  %v869 = vpop.f32.mrf.mxu0
  %v870 = vadd.f32 %v851, %v869
  %871 = vmatmul.bf16.gmra.mxu0 %v255
  %v872 = vpop.f32.mrf.mxu0
  %v873 = vadd.f32 %v854, %v872
  %v874 = vpop.f32.mrf.mxu0
  %v875 = vadd.f32 %v856, %v874
  %876 = vdwg.mxu0
  %v877 = vmax.f32 %v868, 0.0
  %v878 = vmax.f32 %v870, 0.0
  %v879 = vmax.f32 %v873, 0.0
  %v880 = vmax.f32 %v875, 0.0
  %v881 = vld [vmem:[%s3] sm:$0xff]
  %v882 = vld [vmem:[%s3 + $0x8] sm:$0xff]
  %v883 = vld [vmem:[%s3 + $0x10] sm:$0xff]
  %v884 = vld [vmem:[%s3 + $0x18] sm:$0xff]
  %v885 = vpack.c.bf16 %v878, %v877
  %v886 = vpack.c.bf16 %v880, %v879
  %v887 = vld [vmem:[%s2] sm:$0xf]
  %v888 = vld [vmem:[%s2 + $0x4] sm:$0xf]
  %v891 = vunpack.c.l.b16 %v887
  %v892 = vunpack.c.l.b16 %v888
  %v893 = vpack.c.b16 %v892, %v891
  %vm895 = vcmask 130048
  %v897 = vsel %vm895, %v885, 0
  %v900 = vsel %vm895, %v886, 0
  %902 = vmatpush.bf16.msra.mxu0 0
  %903 = vmatpush.bf16.msra.mxu0 0
  %904 = vmatpush.bf16.msra.mxu0 0
  %905 = vmatpush.bf16.msra.mxu0 0
  %906 = vmatpush.bf16.msra.mxu0 0
  %907 = vmatpush.bf16.msra.mxu0 0
  %908 = vmatpush.bf16.msra.mxu0 0
  %909 = vmatpush.bf16.msra.mxu0 %v893
  %910 = vmatmul.bf16.gmra.mxu0 %v897
  %v911 = vpop.f32.mrf.mxu0
  %v912 = vadd.f32 0.0, %v911
  %v913 = vpop.f32.mrf.mxu0
  %v914 = vadd.f32 0.0, %v913
  %915 = vmatmul.bf16.gmra.mxu0 %v900
  %v916 = vpop.f32.mrf.mxu0
  %v917 = vadd.f32 0.0, %v916
  %v918 = vpop.f32.mrf.mxu0
  %v919 = vadd.f32 0.0, %v918
  %920 = vdwg.mxu0
  %v921 = vadd.f32 %v881, %v912
  %v922 = vadd.f32 %v882, %v914
  %v923 = vadd.f32 %v883, %v917
  %v924 = vadd.f32 %v884, %v919
  %v925 = vmax.f32 %v921, 0.0
  %v926 = vmax.f32 %v922, 0.0
  %v927 = vmax.f32 %v923, 0.0
  %v928 = vmax.f32 %v924, 0.0
  %929 = vst [vmem:[%s4] sm:$0xff] %v925
  %930 = vst [vmem:[%s4 + $0x8] sm:$0xff] %v926
  %931 = vst [vmem:[%s4 + $0x10] sm:$0xff] %v927
  %932 = vst [vmem:[%s4 + $0x18] sm:$0xff] %v928
  // Predicated region
  $region18: #{encoder_bot_forward.9} parent=0 // pred_check
    _
  $region19: #{encoder_bot_forward.9} parent=0 // pred_check_branch
    %934 = sbr.rel (0) target = $region21
  $region20: #{encoder_bot_forward.9} parent=0 // pred_region
    _
  $region21: #{encoder_bot_forward.9} parent=0 // pred_fallthru
    _
  // Predicated region
  $region22: #{encoder_bot_forward.9} parent=0 // pred_check
    _
  $region23: #{encoder_bot_forward.9} parent=0 // pred_check_branch
    %936 = sbr.rel (0) target = $region25
  $region24: #{encoder_bot_forward.9} parent=0 // pred_region
    _
  $region25: #{encoder_bot_forward.9} parent=0 // pred_fallthru
    _

</llo_original>
